<compile_context>
chip_gen: v7x
topology: tpu7x:2x2x1
jax: 0.10.0
libtpu: 0.0.40
codegen_flags: <defaults>
</compile_context>

<pallas_src>
import functools

import jax
import jax.numpy as jnp
from jax.experimental import pallas as pl
from jax.experimental.pallas import tpu as pltpu

_KSIZE = 3
_SQRT_HALF = 0.7071067811865476
_SQRT_2_OVER_PI = 0.7978845608028654
# Output-tile cap; re-sweep per generation (v5e/v6e: 128 MiB VMEM, 1.4 TB/s HBM
# vs v7x: 64 MiB, 3.2 TB/s) once real model shapes are known.
_DEFAULT_T4_TILE_CAP = 64


def _round_up(v, m):
    return (v + m - 1) // m * m


def _gelu_tanh(x):
    """tanh-approximate GELU (== torch.nn.GELU(approximate='tanh')).

    One EUP tanh + a handful of VALU ops; |delta| vs exact erf-GELU <= ~1e-3.
    """
    return 0.5 * x * (1.0 + jnp.tanh(_SQRT_2_OVER_PI * (x + 0.044715 * (x * x * x))))


def _gelu_erf(x):
    """Exact (erf-based) GELU matching torch.nn.GELU() default.

    erf via Abramowitz & Stegun 7.1.26 (|err| <= 1.5e-7); exact divide so the
    error bound actually holds (no approx-reciprocal shortcut).
    """
    z = x * _SQRT_HALF
    az = jnp.abs(z)
    t = 1.0 / (1.0 + 0.3275911 * az)
    poly = ((((1.061405429 * t - 1.453152027) * t + 1.421413741) * t
             - 0.284496736) * t + 0.254829592) * t
    erf = jnp.sign(z) * (1.0 - poly * jnp.exp(-az * az))
    return 0.5 * x * (1.0 + erf)


def _out_lens(t_in):
    t1 = t_in - 2                       # stride 1
    t2 = (t1 - _KSIZE) // 2 + 1         # stride 2
    t3 = (t2 - _KSIZE) // 2 + 1
    t4 = (t3 - _KSIZE) // 2 + 1
    return t1, t2, t3, t4


def _tile_lens(t4_tile):
    """Per-tile row counts for an output tile of t4_tile frames (halo included)."""
    t3_t = 2 * t4_tile + 1
    t2_t = 4 * t4_tile + 3
    t1_t = 8 * t4_tile + 7
    tin_t = 8 * t4_tile + 9             # input halo window
    return t1_t, t2_t, t3_t, tin_t


def _pick_vmem_limit_bytes():
    """Per-generation VMEM budget: ~75% of physical, capped at 100 MiB."""
    cap = None
    try:
        cap = getattr(pltpu.get_tpu_info(), "vmem_capacity_bytes", None)
    except Exception:                       # non-TPU trace / older jax
        cap = None
    if not cap:
        cap = 64 * 1024 * 1024              # conservative (v7x-sized) fallback
    return int(min(cap * 3 // 4, 100 * 1024 * 1024))


def _fused_subsample8_kernel(x_ref, w1_ref, b1_ref, w2_ref, b2_ref,
                             w3_ref, b3_ref, w4_ref, b4_ref,
                             o_ref, h1_ref, h2_ref, *, t4_tile, gelu):
    t1_t, t2_t, t3_t, tin_t = _tile_lens(t4_tile)
    # Element offset of this tile's input halo window (a multiple of 8*t4_tile).
    in_off = pl.multiple_of(pl.program_id(1) * (8 * t4_tile), 8)

    def conv3_gelu(tap, w_ref, b_ref, t_out):
        """VALID K=3 conv: 3 MXU matmuls (bf16 operands, f32 acc) + GELU.

        Accumulator is initialized with the broadcast bias (saves one VALU pass).
        """
        cout = w_ref.shape[-1]
        acc = jnp.broadcast_to(b_ref[...], (t_out, cout))           # f32
        for k in range(_KSIZE):
            acc = acc + jnp.dot(tap(k), w_ref[k],
                                preferred_element_type=jnp.float32)
        return gelu(acc)

    # Layer 1 (stride 1): cast the halo window to bf16 ONCE, value-slice taps.
    x_bf = x_ref[pl.ds(in_off, tin_t), :].astype(jnp.bfloat16)
    h1_ref[pl.ds(0, t1_t), :] = conv3_gelu(
        lambda k: x_bf[k:k + t1_t], w1_ref, b1_ref, t1_t)

    # Layer 2 (stride 2): sublane-stride-2 taps from f32 scratch
    # (32-bit strided loads are the safe Mosaic path; see header note).
    h2_ref[pl.ds(0, t2_t), :] = conv3_gelu(
        lambda k: h1_ref[pl.ds(k, t2_t, 2), :].astype(jnp.bfloat16),
        w2_ref, b2_ref, t2_t)

    # Layer 3 (stride 2): write into the front of h1 (layer-1 rows no longer needed).
    h1_ref[pl.ds(0, t3_t), :] = conv3_gelu(
        lambda k: h2_ref[pl.ds(k, t3_t, 2), :].astype(jnp.bfloat16),
        w3_ref, b3_ref, t3_t)

    # Layer 4 (stride 2): taps stay inside the fresh layer-3 region (max row 2*t4_tile);
    # output store is lane-dense (Cout padded to a multiple of 128 in the wrapper).
    o_ref[...] = conv3_gelu(
        lambda k: h1_ref[pl.ds(k, t4_tile, 2), :].astype(jnp.bfloat16),
        w4_ref, b4_ref, t4_tile).astype(o_ref.dtype)


def init_params(key, idim, odim):
    """Deterministic params mirroring torch Conv1d shapes + default init bounds."""
    layers = []
    cfg = [(idim, odim, 1), (odim, odim, 2), (odim, odim, 2), (odim, odim, 2)]
    for (cin, cout, stride) in cfg:
        key, kw, kb = jax.random.split(key, 3)
        bound = 1.0 / (cin * _KSIZE) ** 0.5
        w_torch = jax.random.uniform(kw, (cout, cin, _KSIZE), jnp.float32, -bound, bound)
        b = jax.random.uniform(kb, (cout,), jnp.float32, -bound, bound)
        layers.append((w_torch, b, stride))
    return layers


def gxl_conv1d_subsampling8(x, layers, *, t4_tile=None, approximate_gelu=True):
    """Fused Pallas forward: (B, T, idim) -> (B, T_out, odim), ~8x time subsampling."""
    B, t_in, cin = x.shape
    assert len(layers) == 4
    odim = layers[0][0].shape[0]
    t1, t2, t3, t4 = _out_lens(t_in)
    assert t4 >= 1, "sequence too short for 8x subsampling"

    # --- time tiling (output tile of t4_tile frames; input halo = 8n+9 frames) ---
    if t4_tile is None:
        t4_tile = min(_round_up(t4, 8), _DEFAULT_T4_TILE_CAP)
    t4_tile = _round_up(max(int(t4_tile), 8), 8)
    n_tiles = pl.cdiv(t4, t4_tile)
    t4_pad = n_tiles * t4_tile
    t1_t, t2_t, t3_t, tin_t = _tile_lens(t4_tile)
    # Aliasing guard: layer-4's deepest strided tap (row 2*t4_tile) must stay
    # inside the layer-3 region freshly written to the front of h1.
    assert 2 * t4_tile <= t3_t - 1, (t4_tile, t3_t)

    # Pad time so every tile's halo window [8n*tile, 8n*tile + 8n + 8] is in bounds.
    # Padded rows only feed output rows >= t4, which are sliced off below.
    t_in_pad = max(t_in, 8 * t4_tile * n_tiles + 9)
    x_p = x if t_in_pad == t_in else jnp.pad(x, ((0, 0), (0, t_in_pad - t_in), (0, 0)))

    odim_pad = _round_up(odim, 128)       # lane-dense final store

    def prep(w_torch, b, cout_pad=None):
        # torch Conv1d weight (O, I, K) -> (K, I, O); bf16 operands for the MXU.
        w = jnp.transpose(w_torch, (2, 1, 0)).astype(jnp.bfloat16)
        bias = b.reshape(1, -1).astype(jnp.float32)
        if cout_pad is not None and cout_pad != w.shape[-1]:
            w = jnp.pad(w, ((0, 0), (0, 0), (0, cout_pad - w.shape[-1])))
            bias = jnp.pad(bias, ((0, 0), (0, cout_pad - bias.shape[-1])))
        return w, bias

    w1, b1 = prep(layers[0][0], layers[0][1])
    w2, b2 = prep(layers[1][0], layers[1][1])
    w3, b3 = prep(layers[2][0], layers[2][1])
    w4, b4 = prep(layers[3][0], layers[3][1], cout_pad=odim_pad)

    gelu = _gelu_tanh if approximate_gelu else _gelu_erf
    kernel = functools.partial(_fused_subsample8_kernel, t4_tile=t4_tile, gelu=gelu)

    itemsize = jnp.dtype(x.dtype).itemsize
    flops = int(2 * B * n_tiles * _KSIZE * (t1_t * cin * odim
                                            + (t2_t + t3_t) * odim * odim
                                            + t4_tile * odim * odim_pad))
    transcendentals = int(B * n_tiles * (t1_t + t2_t + t3_t + t4_tile) * odim)
    bytes_accessed = int(B * t_in_pad * cin * itemsize
                         + B * t4_pad * odim_pad * itemsize
                         + 2 * (w1.size + w2.size + w3.size + w4.size)
                         + 4 * (b1.size + b2.size + b3.size + b4.size))

    weight_specs, weight_args = [], []
    for w, b in ((w1, b1), (w2, b2), (w3, b3), (w4, b4)):
        # Constant block index across the whole grid -> weights stay resident,
        # no per-step re-DMA.
        weight_specs += [pl.BlockSpec(w.shape, lambda bb, tt: (0, 0, 0)),
                         pl.BlockSpec(b.shape, lambda bb, tt: (0, 0))]
        weight_args += [w, b]

    out_padded = pl.pallas_call(
        kernel,
        out_shape=jax.ShapeDtypeStruct((B, t4_pad, odim_pad), x.dtype),
        grid=(B, n_tiles),
        in_specs=[pl.BlockSpec((None, t_in_pad, cin), lambda bb, tt: (bb, 0, 0))]
                 + weight_specs,
        out_specs=pl.BlockSpec((None, t4_tile, odim_pad), lambda bb, tt: (bb, tt, 0)),
        scratch_shapes=[pltpu.VMEM((_round_up(t1_t, 8), odim), jnp.float32),
                        pltpu.VMEM((_round_up(t2_t, 8), odim), jnp.float32)],
        compiler_params=pltpu.CompilerParams(
            dimension_semantics=("parallel", "parallel"),   # batch x time-tile
            vmem_limit_bytes=_pick_vmem_limit_bytes()),
        cost_estimate=pl.CostEstimate(flops=flops,
                                      transcendentals=transcendentals,
                                      bytes_accessed=bytes_accessed),
    )(x_p, *weight_args)

    # TODO(synk): for extremely long sequences, tile the input with pl.Element
    # halo blocks (or manual DMA) instead of one resident whole-sequence block.
    return out_padded[:, :t4, :odim]


def reference_forward(x, layers, matmul_dtype=jnp.float32, approximate_gelu=False):
    """Pure-JAX reference of the PyTorch module semantics.

    matmul_dtype=bfloat16 emulates the kernel's bf16 MXU operands with f32
    accumulation; approximate_gelu=True matches the kernel's tanh-GELU default.
    """
    y = x
    for (w_torch, b, stride) in layers:
        w = jnp.transpose(w_torch, (2, 1, 0)).astype(matmul_dtype).astype(jnp.float32)
        yc = y.astype(matmul_dtype).astype(jnp.float32)
        y = jax.lax.conv_general_dilated(
            yc, w, window_strides=(stride,), padding="VALID",
            dimension_numbers=("NWC", "WIO", "NWC"))
        y = jax.nn.gelu(y + b[None, None, :], approximate=approximate_gelu)
    return y


if __name__ == "__main__":
    B, T, idim, odim = 2, 64, 16, 32     # time: 64 -> 62 -> 30 -> 14 -> 6
    key = jax.random.PRNGKey(0)
    kx, kp = jax.random.split(key)
    x = jax.random.normal(kx, (B, T, idim), jnp.float32)
    layers = init_params(kp, idim, odim)

    # Default (tanh-GELU) kernel.
    out = jax.block_until_ready(gxl_conv1d_subsampling8(x, layers))
    ref_match = reference_forward(x, layers, matmul_dtype=jnp.bfloat16,
                                  approximate_gelu=True)
    ref_exact = reference_forward(x, layers, matmul_dtype=jnp.float32,
                                  approximate_gelu=False)
    assert out.shape == ref_exact.shape, (out.shape, ref_exact.shape)
    assert jnp.allclose(out, ref_match, atol=5e-3, rtol=5e-3), \
        float(jnp.max(jnp.abs(out - ref_match)))
    assert jnp.allclose(out, ref_exact, atol=3e-2, rtol=3e-2), \
        float(jnp.max(jnp.abs(out - ref_exact)))

    # Exact-erf variant (faithful to torch.nn.GELU() default).
    out_exact = jax.block_until_ready(
        gxl_conv1d_subsampling8(x, layers, approximate_gelu=False))
    ref_exact_bf16 = reference_forward(x, layers, matmul_dtype=jnp.bfloat16,
                                       approximate_gelu=False)
    assert jnp.allclose(out_exact, ref_exact_bf16, atol=5e-3, rtol=5e-3), \
        float(jnp.max(jnp.abs(out_exact - ref_exact_bf16)))

    print("KERNEL_OK")
</pallas_src>

<mosaic_0001>
module attributes {stable_mosaic.version = 11 : i64} {
  func.func @_fused_subsample8_kernel(%arg0: i32, %arg1: i32, %arg2: memref<1x73x16xf32, #tpu.memory_space<vmem>>, %arg3: memref<3x16x32xbf16, #tpu.memory_space<vmem>>, %arg4: memref<1x32xf32, #tpu.memory_space<vmem>>, %arg5: memref<3x32x32xbf16, #tpu.memory_space<vmem>>, %arg6: memref<1x32xf32, #tpu.memory_space<vmem>>, %arg7: memref<3x32x32xbf16, #tpu.memory_space<vmem>>, %arg8: memref<1x32xf32, #tpu.memory_space<vmem>>, %arg9: memref<3x32x128xbf16, #tpu.memory_space<vmem>>, %arg10: memref<1x128xf32, #tpu.memory_space<vmem>>, %arg11: memref<1x8x128xf32, #tpu.memory_space<vmem>>, %arg12: memref<72x32xf32, #tpu.memory_space<vmem>>, %arg13: memref<40x32xf32, #tpu.memory_space<vmem>>) attributes {dimension_semantics = [#tpu.dimension_semantics<parallel>, #tpu.dimension_semantics<parallel>], iteration_bounds = array<i64: 2, 1>, scalar_prefetch = 0 : i64, scratch_operands = 2 : i64, tpu.core_type = #tpu.core_type<tc>, window_params = [{transform_indices = @transform_0, window_bounds = array<i64: 1, 73, 16>}, {pipeline_mode = #tpu.pipeline_mode<synchronous>, transform_indices = @transform_1, window_bounds = array<i64: 3, 16, 32>}, {pipeline_mode = #tpu.pipeline_mode<synchronous>, transform_indices = @transform_2, window_bounds = array<i64: 1, 32>}, {pipeline_mode = #tpu.pipeline_mode<synchronous>, transform_indices = @transform_3, window_bounds = array<i64: 3, 32, 32>}, {pipeline_mode = #tpu.pipeline_mode<synchronous>, transform_indices = @transform_4, window_bounds = array<i64: 1, 32>}, {pipeline_mode = #tpu.pipeline_mode<synchronous>, transform_indices = @transform_5, window_bounds = array<i64: 3, 32, 32>}, {pipeline_mode = #tpu.pipeline_mode<synchronous>, transform_indices = @transform_6, window_bounds = array<i64: 1, 32>}, {pipeline_mode = #tpu.pipeline_mode<synchronous>, transform_indices = @transform_7, window_bounds = array<i64: 3, 32, 128>}, {pipeline_mode = #tpu.pipeline_mode<synchronous>, transform_indices = @transform_8, window_bounds = array<i64: 1, 128>}, {transform_indices = @transform_9, window_bounds = array<i64: 1, 8, 128>}]} {
    %c64_i32 = arith.constant 64 : i32
    %0 = arith.muli %arg1, %c64_i32 : i32
    %1 = tpu.assume_multiple %0, 8 : i32
    %c0 = arith.constant 0 : index
    %2 = arith.index_cast %1 : i32 to index
    %c0_0 = arith.constant 0 : index
    %3 = vector.load %arg2[%c0, %2, %c0_0] : memref<1x73x16xf32, #tpu.memory_space<vmem>>, vector<1x73x16xf32>
    %4 = vector.shape_cast %3 : vector<1x73x16xf32> to vector<73x16xf32>
    %5 = arith.truncf %4 : vector<73x16xf32> to vector<73x16xbf16>
    %c0_1 = arith.constant 0 : index
    %c0_2 = arith.constant 0 : index
    %6 = vector.load %arg4[%c0_1, %c0_2] : memref<1x32xf32, #tpu.memory_space<vmem>>, vector<1x32xf32>
    %7 = vector.shape_cast %6 : vector<1x32xf32> to vector<1x32xf32>
    %8 = vector.broadcast %7 : vector<1x32xf32> to vector<71x32xf32>
    %9 = vector.extract_strided_slice %5 {offsets = [0, 0], sizes = [71, 16], strides = [1, 1]} : vector<73x16xbf16> to vector<71x16xbf16>
    %c0_3 = arith.constant 0 : index
    %c0_4 = arith.constant 0 : index
    %c0_5 = arith.constant 0 : index
    %10 = vector.load %arg3[%c0_3, %c0_4, %c0_5] : memref<3x16x32xbf16, #tpu.memory_space<vmem>>, vector<1x16x32xbf16>
    %11 = vector.shape_cast %10 : vector<1x16x32xbf16> to vector<16x32xbf16>
    %cst = arith.constant dense<0.000000e+00> : vector<71x32xf32>
    %12 = tpu.matmul %9, %11, %cst {dimension_numbers = #tpu.dot_dimension_numbers<[1], [0], [0], [1], [0, 0, 1, 1], [], []>} : vector<71x16xbf16>, vector<16x32xbf16>, vector<71x32xf32> -> vector<71x32xf32>
    %13 = arith.addf %8, %12 : vector<71x32xf32>
    %14 = vector.extract_strided_slice %5 {offsets = [1, 0], sizes = [71, 16], strides = [1, 1]} : vector<73x16xbf16> to vector<71x16xbf16>
    %c1 = arith.constant 1 : index
    %c0_6 = arith.constant 0 : index
    %c0_7 = arith.constant 0 : index
    %15 = vector.load %arg3[%c1, %c0_6, %c0_7] : memref<3x16x32xbf16, #tpu.memory_space<vmem>>, vector<1x16x32xbf16>
    %16 = vector.shape_cast %15 : vector<1x16x32xbf16> to vector<16x32xbf16>
    %cst_8 = arith.constant dense<0.000000e+00> : vector<71x32xf32>
    %17 = tpu.matmul %14, %16, %cst_8 {dimension_numbers = #tpu.dot_dimension_numbers<[1], [0], [0], [1], [0, 0, 1, 1], [], []>} : vector<71x16xbf16>, vector<16x32xbf16>, vector<71x32xf32> -> vector<71x32xf32>
    %18 = arith.addf %13, %17 : vector<71x32xf32>
    %19 = vector.extract_strided_slice %5 {offsets = [2, 0], sizes = [71, 16], strides = [1, 1]} : vector<73x16xbf16> to vector<71x16xbf16>
    %c2 = arith.constant 2 : index
    %c0_9 = arith.constant 0 : index
    %c0_10 = arith.constant 0 : index
    %20 = vector.load %arg3[%c2, %c0_9, %c0_10] : memref<3x16x32xbf16, #tpu.memory_space<vmem>>, vector<1x16x32xbf16>
    %21 = vector.shape_cast %20 : vector<1x16x32xbf16> to vector<16x32xbf16>
    %cst_11 = arith.constant dense<0.000000e+00> : vector<71x32xf32>
    %22 = tpu.matmul %19, %21, %cst_11 {dimension_numbers = #tpu.dot_dimension_numbers<[1], [0], [0], [1], [0, 0, 1, 1], [], []>} : vector<71x16xbf16>, vector<16x32xbf16>, vector<71x32xf32> -> vector<71x32xf32>
    %23 = arith.addf %18, %22 : vector<71x32xf32>
    %cst_12 = arith.constant 5.000000e-01 : f32
    %24 = vector.broadcast %cst_12 : f32 to vector<71x32xf32>
    %25 = arith.mulf %24, %23 : vector<71x32xf32>
    %26 = arith.mulf %23, %23 : vector<71x32xf32>
    %27 = arith.mulf %26, %23 : vector<71x32xf32>
    %cst_13 = arith.constant 4.471500e-02 : f32
    %28 = vector.broadcast %cst_13 : f32 to vector<71x32xf32>
    %29 = arith.mulf %28, %27 : vector<71x32xf32>
    %30 = arith.addf %23, %29 : vector<71x32xf32>
    %cst_14 = arith.constant 0.797884583 : f32
    %31 = vector.broadcast %cst_14 : f32 to vector<71x32xf32>
    %32 = arith.mulf %31, %30 : vector<71x32xf32>
    %33 = math.tanh %32 : vector<71x32xf32>
    %cst_15 = arith.constant 1.000000e+00 : f32
    %34 = vector.broadcast %cst_15 : f32 to vector<71x32xf32>
    %35 = arith.addf %34, %33 : vector<71x32xf32>
    %36 = arith.mulf %25, %35 : vector<71x32xf32>
    %c0_16 = arith.constant 0 : index
    %c0_17 = arith.constant 0 : index
    %37 = vector.load %arg12[%c0_16, %c0_17] : memref<72x32xf32, #tpu.memory_space<vmem>>, vector<71x32xf32>
    tpu.vector_store %arg12[%c0_16, %c0_17], %36 {strides = array<i32>} : memref<72x32xf32, #tpu.memory_space<vmem>>, vector<71x32xf32>,
    %c0_18 = arith.constant 0 : index
    %c0_19 = arith.constant 0 : index
    %38 = vector.load %arg6[%c0_18, %c0_19] : memref<1x32xf32, #tpu.memory_space<vmem>>, vector<1x32xf32>
    %39 = vector.shape_cast %38 : vector<1x32xf32> to vector<1x32xf32>
    %40 = vector.broadcast %39 : vector<1x32xf32> to vector<35x32xf32>
    %c0_20 = arith.constant 0 : index
    %c0_21 = arith.constant 0 : index
    %41 = tpu.strided_load %arg12[%c0_20, %c0_21] {strides = array<i32: 2, 1>} : memref<72x32xf32, #tpu.memory_space<vmem>>, vector<35x32xf32>
    %42 = arith.truncf %41 : vector<35x32xf32> to vector<35x32xbf16>
    %c0_22 = arith.constant 0 : index
    %c0_23 = arith.constant 0 : index
    %c0_24 = arith.constant 0 : index
    %43 = vector.load %arg5[%c0_22, %c0_23, %c0_24] : memref<3x32x32xbf16, #tpu.memory_space<vmem>>, vector<1x32x32xbf16>
    %44 = vector.shape_cast %43 : vector<1x32x32xbf16> to vector<32x32xbf16>
    %cst_25 = arith.constant dense<0.000000e+00> : vector<35x32xf32>
    %45 = tpu.matmul %42, %44, %cst_25 {dimension_numbers = #tpu.dot_dimension_numbers<[1], [0], [0], [1], [0, 0, 1, 1], [], []>} : vector<35x32xbf16>, vector<32x32xbf16>, vector<35x32xf32> -> vector<35x32xf32>
    %46 = arith.addf %40, %45 : vector<35x32xf32>
    %c1_26 = arith.constant 1 : index
    %c0_27 = arith.constant 0 : index
    %47 = tpu.strided_load %arg12[%c1_26, %c0_27] {strides = array<i32: 2, 1>} : memref<72x32xf32, #tpu.memory_space<vmem>>, vector<35x32xf32>
    %48 = arith.truncf %47 : vector<35x32xf32> to vector<35x32xbf16>
    %c1_28 = arith.constant 1 : index
    %c0_29 = arith.constant 0 : index
    %c0_30 = arith.constant 0 : index
    %49 = vector.load %arg5[%c1_28, %c0_29, %c0_30] : memref<3x32x32xbf16, #tpu.memory_space<vmem>>, vector<1x32x32xbf16>
    %50 = vector.shape_cast %49 : vector<1x32x32xbf16> to vector<32x32xbf16>
    %cst_31 = arith.constant dense<0.000000e+00> : vector<35x32xf32>
    %51 = tpu.matmul %48, %50, %cst_31 {dimension_numbers = #tpu.dot_dimension_numbers<[1], [0], [0], [1], [0, 0, 1, 1], [], []>} : vector<35x32xbf16>, vector<32x32xbf16>, vector<35x32xf32> -> vector<35x32xf32>
    %52 = arith.addf %46, %51 : vector<35x32xf32>
    %c2_32 = arith.constant 2 : index
    %c0_33 = arith.constant 0 : index
    %53 = tpu.strided_load %arg12[%c2_32, %c0_33] {strides = array<i32: 2, 1>} : memref<72x32xf32, #tpu.memory_space<vmem>>, vector<35x32xf32>
    %54 = arith.truncf %53 : vector<35x32xf32> to vector<35x32xbf16>
    %c2_34 = arith.constant 2 : index
    %c0_35 = arith.constant 0 : index
    %c0_36 = arith.constant 0 : index
    %55 = vector.load %arg5[%c2_34, %c0_35, %c0_36] : memref<3x32x32xbf16, #tpu.memory_space<vmem>>, vector<1x32x32xbf16>
    %56 = vector.shape_cast %55 : vector<1x32x32xbf16> to vector<32x32xbf16>
    %cst_37 = arith.constant dense<0.000000e+00> : vector<35x32xf32>
    %57 = tpu.matmul %54, %56, %cst_37 {dimension_numbers = #tpu.dot_dimension_numbers<[1], [0], [0], [1], [0, 0, 1, 1], [], []>} : vector<35x32xbf16>, vector<32x32xbf16>, vector<35x32xf32> -> vector<35x32xf32>
    %58 = arith.addf %52, %57 : vector<35x32xf32>
    %cst_38 = arith.constant 5.000000e-01 : f32
    %59 = vector.broadcast %cst_38 : f32 to vector<35x32xf32>
    %60 = arith.mulf %59, %58 : vector<35x32xf32>
    %61 = arith.mulf %58, %58 : vector<35x32xf32>
    %62 = arith.mulf %61, %58 : vector<35x32xf32>
    %cst_39 = arith.constant 4.471500e-02 : f32
    %63 = vector.broadcast %cst_39 : f32 to vector<35x32xf32>
    %64 = arith.mulf %63, %62 : vector<35x32xf32>
    %65 = arith.addf %58, %64 : vector<35x32xf32>
    %cst_40 = arith.constant 0.797884583 : f32
    %66 = vector.broadcast %cst_40 : f32 to vector<35x32xf32>
    %67 = arith.mulf %66, %65 : vector<35x32xf32>
    %68 = math.tanh %67 : vector<35x32xf32>
    %cst_41 = arith.constant 1.000000e+00 : f32
    %69 = vector.broadcast %cst_41 : f32 to vector<35x32xf32>
    %70 = arith.addf %69, %68 : vector<35x32xf32>
    %71 = arith.mulf %60, %70 : vector<35x32xf32>
    %c0_42 = arith.constant 0 : index
    %c0_43 = arith.constant 0 : index
    %72 = vector.load %arg13[%c0_42, %c0_43] : memref<40x32xf32, #tpu.memory_space<vmem>>, vector<35x32xf32>
    tpu.vector_store %arg13[%c0_42, %c0_43], %71 {strides = array<i32>} : memref<40x32xf32, #tpu.memory_space<vmem>>, vector<35x32xf32>,
    %c0_44 = arith.constant 0 : index
    %c0_45 = arith.constant 0 : index
    %73 = vector.load %arg8[%c0_44, %c0_45] : memref<1x32xf32, #tpu.memory_space<vmem>>, vector<1x32xf32>
    %74 = vector.shape_cast %73 : vector<1x32xf32> to vector<1x32xf32>
    %75 = vector.broadcast %74 : vector<1x32xf32> to vector<17x32xf32>
    %c0_46 = arith.constant 0 : index
    %c0_47 = arith.constant 0 : index
    %76 = tpu.strided_load %arg13[%c0_46, %c0_47] {strides = array<i32: 2, 1>} : memref<40x32xf32, #tpu.memory_space<vmem>>, vector<17x32xf32>
    %77 = arith.truncf %76 : vector<17x32xf32> to vector<17x32xbf16>
    %c0_48 = arith.constant 0 : index
    %c0_49 = arith.constant 0 : index
    %c0_50 = arith.constant 0 : index
    %78 = vector.load %arg7[%c0_48, %c0_49, %c0_50] : memref<3x32x32xbf16, #tpu.memory_space<vmem>>, vector<1x32x32xbf16>
    %79 = vector.shape_cast %78 : vector<1x32x32xbf16> to vector<32x32xbf16>
    %cst_51 = arith.constant dense<0.000000e+00> : vector<17x32xf32>
    %80 = tpu.matmul %77, %79, %cst_51 {dimension_numbers = #tpu.dot_dimension_numbers<[1], [0], [0], [1], [0, 0, 1, 1], [], []>} : vector<17x32xbf16>, vector<32x32xbf16>, vector<17x32xf32> -> vector<17x32xf32>
    %81 = arith.addf %75, %80 : vector<17x32xf32>
    %c1_52 = arith.constant 1 : index
    %c0_53 = arith.constant 0 : index
    %82 = tpu.strided_load %arg13[%c1_52, %c0_53] {strides = array<i32: 2, 1>} : memref<40x32xf32, #tpu.memory_space<vmem>>, vector<17x32xf32>
    %83 = arith.truncf %82 : vector<17x32xf32> to vector<17x32xbf16>
    %c1_54 = arith.constant 1 : index
    %c0_55 = arith.constant 0 : index
    %c0_56 = arith.constant 0 : index
    %84 = vector.load %arg7[%c1_54, %c0_55, %c0_56] : memref<3x32x32xbf16, #tpu.memory_space<vmem>>, vector<1x32x32xbf16>
    %85 = vector.shape_cast %84 : vector<1x32x32xbf16> to vector<32x32xbf16>
    %cst_57 = arith.constant dense<0.000000e+00> : vector<17x32xf32>
    %86 = tpu.matmul %83, %85, %cst_57 {dimension_numbers = #tpu.dot_dimension_numbers<[1], [0], [0], [1], [0, 0, 1, 1], [], []>} : vector<17x32xbf16>, vector<32x32xbf16>, vector<17x32xf32> -> vector<17x32xf32>
    %87 = arith.addf %81, %86 : vector<17x32xf32>
    %c2_58 = arith.constant 2 : index
    %c0_59 = arith.constant 0 : index
    %88 = tpu.strided_load %arg13[%c2_58, %c0_59] {strides = array<i32: 2, 1>} : memref<40x32xf32, #tpu.memory_space<vmem>>, vector<17x32xf32>
    %89 = arith.truncf %88 : vector<17x32xf32> to vector<17x32xbf16>
    %c2_60 = arith.constant 2 : index
    %c0_61 = arith.constant 0 : index
    %c0_62 = arith.constant 0 : index
    %90 = vector.load %arg7[%c2_60, %c0_61, %c0_62] : memref<3x32x32xbf16, #tpu.memory_space<vmem>>, vector<1x32x32xbf16>
    %91 = vector.shape_cast %90 : vector<1x32x32xbf16> to vector<32x32xbf16>
    %cst_63 = arith.constant dense<0.000000e+00> : vector<17x32xf32>
    %92 = tpu.matmul %89, %91, %cst_63 {dimension_numbers = #tpu.dot_dimension_numbers<[1], [0], [0], [1], [0, 0, 1, 1], [], []>} : vector<17x32xbf16>, vector<32x32xbf16>, vector<17x32xf32> -> vector<17x32xf32>
    %93 = arith.addf %87, %92 : vector<17x32xf32>
    %cst_64 = arith.constant 5.000000e-01 : f32
    %94 = vector.broadcast %cst_64 : f32 to vector<17x32xf32>
    %95 = arith.mulf %94, %93 : vector<17x32xf32>
    %96 = arith.mulf %93, %93 : vector<17x32xf32>
    %97 = arith.mulf %96, %93 : vector<17x32xf32>
    %cst_65 = arith.constant 4.471500e-02 : f32
    %98 = vector.broadcast %cst_65 : f32 to vector<17x32xf32>
    %99 = arith.mulf %98, %97 : vector<17x32xf32>
    %100 = arith.addf %93, %99 : vector<17x32xf32>
    %cst_66 = arith.constant 0.797884583 : f32
    %101 = vector.broadcast %cst_66 : f32 to vector<17x32xf32>
    %102 = arith.mulf %101, %100 : vector<17x32xf32>
    %103 = math.tanh %102 : vector<17x32xf32>
    %cst_67 = arith.constant 1.000000e+00 : f32
    %104 = vector.broadcast %cst_67 : f32 to vector<17x32xf32>
    %105 = arith.addf %104, %103 : vector<17x32xf32>
    %106 = arith.mulf %95, %105 : vector<17x32xf32>
    %c0_68 = arith.constant 0 : index
    %c0_69 = arith.constant 0 : index
    %107 = vector.load %arg12[%c0_68, %c0_69] : memref<72x32xf32, #tpu.memory_space<vmem>>, vector<17x32xf32>
    tpu.vector_store %arg12[%c0_68, %c0_69], %106 {strides = array<i32>} : memref<72x32xf32, #tpu.memory_space<vmem>>, vector<17x32xf32>,
    %c0_70 = arith.constant 0 : index
    %c0_71 = arith.constant 0 : index
    %108 = vector.load %arg10[%c0_70, %c0_71] : memref<1x128xf32, #tpu.memory_space<vmem>>, vector<1x128xf32>
    %109 = vector.shape_cast %108 : vector<1x128xf32> to vector<1x128xf32>
    %110 = vector.broadcast %109 : vector<1x128xf32> to vector<8x128xf32>
    %c0_72 = arith.constant 0 : index
    %c0_73 = arith.constant 0 : index
    %111 = tpu.strided_load %arg12[%c0_72, %c0_73] {strides = array<i32: 2, 1>} : memref<72x32xf32, #tpu.memory_space<vmem>>, vector<8x32xf32>
    %112 = arith.truncf %111 : vector<8x32xf32> to vector<8x32xbf16>
    %c0_74 = arith.constant 0 : index
    %c0_75 = arith.constant 0 : index
    %c0_76 = arith.constant 0 : index
    %113 = vector.load %arg9[%c0_74, %c0_75, %c0_76] : memref<3x32x128xbf16, #tpu.memory_space<vmem>>, vector<1x32x128xbf16>
    %114 = vector.shape_cast %113 : vector<1x32x128xbf16> to vector<32x128xbf16>
    %cst_77 = arith.constant dense<0.000000e+00> : vector<8x128xf32>
    %115 = tpu.matmul %112, %114, %cst_77 {dimension_numbers = #tpu.dot_dimension_numbers<[1], [0], [0], [1], [0, 0, 1, 1], [], []>} : vector<8x32xbf16>, vector<32x128xbf16>, vector<8x128xf32> -> vector<8x128xf32>
    %116 = arith.addf %110, %115 : vector<8x128xf32>
    %c1_78 = arith.constant 1 : index
    %c0_79 = arith.constant 0 : index
    %117 = tpu.strided_load %arg12[%c1_78, %c0_79] {strides = array<i32: 2, 1>} : memref<72x32xf32, #tpu.memory_space<vmem>>, vector<8x32xf32>
    %118 = arith.truncf %117 : vector<8x32xf32> to vector<8x32xbf16>
    %c1_80 = arith.constant 1 : index
    %c0_81 = arith.constant 0 : index
    %c0_82 = arith.constant 0 : index
    %119 = vector.load %arg9[%c1_80, %c0_81, %c0_82] : memref<3x32x128xbf16, #tpu.memory_space<vmem>>, vector<1x32x128xbf16>
    %120 = vector.shape_cast %119 : vector<1x32x128xbf16> to vector<32x128xbf16>
    %cst_83 = arith.constant dense<0.000000e+00> : vector<8x128xf32>
    %121 = tpu.matmul %118, %120, %cst_83 {dimension_numbers = #tpu.dot_dimension_numbers<[1], [0], [0], [1], [0, 0, 1, 1], [], []>} : vector<8x32xbf16>, vector<32x128xbf16>, vector<8x128xf32> -> vector<8x128xf32>
    %122 = arith.addf %116, %121 : vector<8x128xf32>
    %c2_84 = arith.constant 2 : index
    %c0_85 = arith.constant 0 : index
    %123 = tpu.strided_load %arg12[%c2_84, %c0_85] {strides = array<i32: 2, 1>} : memref<72x32xf32, #tpu.memory_space<vmem>>, vector<8x32xf32>
    %124 = arith.truncf %123 : vector<8x32xf32> to vector<8x32xbf16>
    %c2_86 = arith.constant 2 : index
    %c0_87 = arith.constant 0 : index
    %c0_88 = arith.constant 0 : index
    %125 = vector.load %arg9[%c2_86, %c0_87, %c0_88] : memref<3x32x128xbf16, #tpu.memory_space<vmem>>, vector<1x32x128xbf16>
    %126 = vector.shape_cast %125 : vector<1x32x128xbf16> to vector<32x128xbf16>
    %cst_89 = arith.constant dense<0.000000e+00> : vector<8x128xf32>
    %127 = tpu.matmul %124, %126, %cst_89 {dimension_numbers = #tpu.dot_dimension_numbers<[1], [0], [0], [1], [0, 0, 1, 1], [], []>} : vector<8x32xbf16>, vector<32x128xbf16>, vector<8x128xf32> -> vector<8x128xf32>
    %128 = arith.addf %122, %127 : vector<8x128xf32>
    %cst_90 = arith.constant 5.000000e-01 : f32
    %129 = vector.broadcast %cst_90 : f32 to vector<8x128xf32>
    %130 = arith.mulf %129, %128 : vector<8x128xf32>
    %131 = arith.mulf %128, %128 : vector<8x128xf32>
    %132 = arith.mulf %131, %128 : vector<8x128xf32>
    %cst_91 = arith.constant 4.471500e-02 : f32
    %133 = vector.broadcast %cst_91 : f32 to vector<8x128xf32>
    %134 = arith.mulf %133, %132 : vector<8x128xf32>
    %135 = arith.addf %128, %134 : vector<8x128xf32>
    %cst_92 = arith.constant 0.797884583 : f32
    %136 = vector.broadcast %cst_92 : f32 to vector<8x128xf32>
    %137 = arith.mulf %136, %135 : vector<8x128xf32>
    %138 = math.tanh %137 : vector<8x128xf32>
    %cst_93 = arith.constant 1.000000e+00 : f32
    %139 = vector.broadcast %cst_93 : f32 to vector<8x128xf32>
    %140 = arith.addf %139, %138 : vector<8x128xf32>
    %141 = arith.mulf %130, %140 : vector<8x128xf32>
    %c0_94 = arith.constant 0 : index
    %c0_95 = arith.constant 0 : index
    %c0_96 = arith.constant 0 : index
    %142 = vector.load %arg11[%c0_94, %c0_95, %c0_96] : memref<1x8x128xf32, #tpu.memory_space<vmem>>, vector<1x8x128xf32>
    %143 = vector.shape_cast %142 : vector<1x8x128xf32> to vector<8x128xf32>
    %144 = vector.shape_cast %141 : vector<8x128xf32> to vector<1x8x128xf32>
    tpu.vector_store %arg11[%c0_94, %c0_95, %c0_96], %144 {strides = array<i32>} : memref<1x8x128xf32, #tpu.memory_space<vmem>>, vector<1x8x128xf32>,
    return
  }
  func.func @transform_0(%arg0: i32, %arg1: i32) -> (i32, i32, i32) {
    %c0_i32 = arith.constant 0 : i32
    %c0_i32_0 = arith.constant 0 : i32
    %c0_i32_1 = arith.constant 0 : i32
    return %arg0, %c0_i32, %c0_i32_0 : i32, i32, i32
  }
  func.func @transform_1(%arg0: i32, %arg1: i32) -> (i32, i32, i32) {
    %c0_i32 = arith.constant 0 : i32
    %c0_i32_0 = arith.constant 0 : i32
    %c0_i32_1 = arith.constant 0 : i32
    %c0_i32_2 = arith.constant 0 : i32
    return %c0_i32, %c0_i32_0, %c0_i32_1 : i32, i32, i32
  }
  func.func @transform_2(%arg0: i32, %arg1: i32) -> (i32, i32) {
    %c0_i32 = arith.constant 0 : i32
    %c0_i32_0 = arith.constant 0 : i32
    %c0_i32_1 = arith.constant 0 : i32
    return %c0_i32, %c0_i32_0 : i32, i32
  }
  func.func @transform_3(%arg0: i32, %arg1: i32) -> (i32, i32, i32) {
    %c0_i32 = arith.constant 0 : i32
    %c0_i32_0 = arith.constant 0 : i32
    %c0_i32_1 = arith.constant 0 : i32
    %c0_i32_2 = arith.constant 0 : i32
    return %c0_i32, %c0_i32_0, %c0_i32_1 : i32, i32, i32
  }
  func.func @transform_4(%arg0: i32, %arg1: i32) -> (i32, i32) {
    %c0_i32 = arith.constant 0 : i32
    %c0_i32_0 = arith.constant 0 : i32
    %c0_i32_1 = arith.constant 0 : i32
    return %c0_i32, %c0_i32_0 : i32, i32
  }
  func.func @transform_5(%arg0: i32, %arg1: i32) -> (i32, i32, i32) {
    %c0_i32 = arith.constant 0 : i32
    %c0_i32_0 = arith.constant 0 : i32
    %c0_i32_1 = arith.constant 0 : i32
    %c0_i32_2 = arith.constant 0 : i32
    return %c0_i32, %c0_i32_0, %c0_i32_1 : i32, i32, i32
  }
  func.func @transform_6(%arg0: i32, %arg1: i32) -> (i32, i32) {
    %c0_i32 = arith.constant 0 : i32
    %c0_i32_0 = arith.constant 0 : i32
    %c0_i32_1 = arith.constant 0 : i32
    return %c0_i32, %c0_i32_0 : i32, i32
  }
  func.func @transform_7(%arg0: i32, %arg1: i32) -> (i32, i32, i32) {
    %c0_i32 = arith.constant 0 : i32
    %c0_i32_0 = arith.constant 0 : i32
    %c0_i32_1 = arith.constant 0 : i32
    %c0_i32_2 = arith.constant 0 : i32
    return %c0_i32, %c0_i32_0, %c0_i32_1 : i32, i32, i32
  }
  func.func @transform_8(%arg0: i32, %arg1: i32) -> (i32, i32) {
    %c0_i32 = arith.constant 0 : i32
    %c0_i32_0 = arith.constant 0 : i32
    %c0_i32_1 = arith.constant 0 : i32
    return %c0_i32, %c0_i32_0 : i32, i32
  }
  func.func @transform_9(%arg0: i32, %arg1: i32) -> (i32, i32, i32) {
    %c0_i32 = arith.constant 0 : i32
    %c0_i32_0 = arith.constant 0 : i32
    return %arg0, %arg1, %c0_i32 : i32, i32, i32
  }
}

</mosaic_0001>

<llo_original>
// kernel: tpu_custom_call.1
$region0: #{tpu_custom_call.1}
  #allocation0 [shape = 'u32[]', space=smem, size = 0x4, offset = 0x4, fixed_abs, tag = 'smem constant byte address 0x4 - core index']
  #allocation1 [shape = 'u32[144,128]{1,0:T(1,128)}', space=vmem, size = 0x12000, scoped, tag = 'internal scratch']
  #allocation2 [shape = 'f32[72,32]{1,0:T(8,128)}', space=vmem, size = 0x9000, scoped, tag = 'scratch operand']
  #allocation3 [shape = 'f32[40,32]{1,0:T(8,128)}', space=vmem, size = 0x5000, scoped, tag = 'scratch operand']
  %s0 = inlined_call_operand.vmem [shape: f32[2,73,16], index: 0, kind: input, shape index: {}]
  %s1 = inlined_call_operand.vmem [shape: bf16[3,16,32], index: 1, kind: input, shape index: {}]
  %s2 = inlined_call_operand.vmem [shape: f32[1,32], index: 2, kind: input, shape index: {}]
  %s3 = inlined_call_operand.vmem [shape: bf16[3,32,32], index: 3, kind: input, shape index: {}]
  %s4 = inlined_call_operand.vmem [shape: f32[1,32], index: 4, kind: input, shape index: {}]
  %s5 = inlined_call_operand.vmem [shape: bf16[3,32,32], index: 5, kind: input, shape index: {}]
  %s6 = inlined_call_operand.vmem [shape: f32[1,32], index: 6, kind: input, shape index: {}]
  %s7 = inlined_call_operand.vmem [shape: bf16[3,32,128], index: 7, kind: input, shape index: {}]
  %s8 = inlined_call_operand.vmem [shape: f32[1,128], index: 8, kind: input, shape index: {}]
  %s9 = inlined_call_operand.hbm [shape: f32[2,8,128], index: 9, kind: output, shape index: {}]
  %s10 = sld [smem:[#allocation0]]
  $region69: #{tpu_custom_call.1} parent=0
    _
  %s12 = ssub.s32 1, %s10
  %s13 = scalar_select 0, %s12, %s10
  $region1: #{tpu_custom_call.1} parent=0
    #allocation4 [shape = 'u8[8192]{0}', space=vmem, size = 0x2000, scoped, tag = 'output window, operand 0']
    #allocation5 [shape = 's32[2]{0}', space=sflag, size = 0x8, scoped, tag = 'scoped memory for tpu_custom_call.1']
    %14 = vsyncpa [#allocation5], 0
    %s15 = scalar_lea.sflag [#allocation5], 1
    %16 = vsyncpa %s15, 0
    loop: start=0, step=1, limit=4
    $region2: #{tpu_custom_call.1} parent=1 // loop_pre_header
      _
    $region3: #{tpu_custom_call.1} parent=1 // loop_header
      %s18 = sphi 0, %s22
      %p19 = scmp.ge.s32.totalorder %s18, 4
      %s25 = sphi 0, %s37
      %s26 = sphi 0, %s33
      %s27 = sphi 0, %s25
      %s28 = sphi 0, %s26
      %s29 = sphi 0, %s27
      %s30 = sphi 0, %s28
      %s40 = sphi 0, %s42
      %s43 = sphi 0, %s40
      %s44 = sphi 0, %s43
      %s60 = sphi 0, %s44
      %s64 = sphi 0, %s64
      %s66 = sphi 0, %s64
      %s67 = sphi 0, %s66
      %s81 = sphi 0, %s67
      %s85 = sphi 0, %s85
      %s87 = sphi 0, %s85
      %s88 = sphi 0, %s87
      %s102 = sphi 0, %s88
      %s106 = sphi 0, %s106
      %s108 = sphi 0, %s106
      %s109 = sphi 0, %s108
      %s123 = sphi 0, %s109
      %s127 = sphi 0, %s127
      %s129 = sphi 0, %s127
      %s130 = sphi 0, %s129
      %s144 = sphi 0, %s130
      %s148 = sphi 0, %s148
      %s150 = sphi 0, %s148
      %s151 = sphi 0, %s150
      %s165 = sphi 0, %s151
      %s169 = sphi 0, %s169
      %s171 = sphi 0, %s169
      %s172 = sphi 0, %s171
      %s186 = sphi 0, %s172
      %s190 = sphi 0, %s190
      %s192 = sphi 0, %s190
      %s193 = sphi 0, %s192
      %s207 = sphi 0, %s193
      %s211 = sphi 0, %s211
      %s213 = sphi 0, %s211
      %s214 = sphi 0, %s213
      %s228 = sphi 0, %s214
      %s236 = sphi 0, %s238
      %s239 = sphi 0, %s236
      %s240 = sphi 0, %s239
      %s256 = sphi 0, %s240
    $region4: #{tpu_custom_call.1} parent=1 // loop_header_branch
      %21 = sbr.rel (%p19) target = $region8
    $region5: #{tpu_custom_call.1} parent=1 // loop_body
      %s23 = ssub.s32 %s18, 1
      %s24 = ssub.s32 %s18, 2
      %s31 = sadd.s32 1, %s26
      %p32 = scmp.ge.s32.totalorder %s31, 1
      %s33 = scalar_select %p32, 0, %s31
      %s34 = sadd.s32 1, %s25
      %s35 = scalar_select %p32, %s34, %s25
      %p36 = scmp.ge.s32.totalorder %s35, 2
      %s37 = scalar_select %p36, 0, %s35
      %s38 = ssub.s32 %s25, %s37
      %p39 = scmp.eq.s32.totalorder %s38, 0
      %s41 = sadd.s32 %s40, 1
      %s42 = scalar_select %p39, %s40, %s41
      %p45 = pneg %p39
      %p46 = scmp.eq.s32.totalorder %s18, 1
      %p47 = por %p45, %p46
      %p48 = scmp.ne.s32.totalorder %s40, %s43
      %p49 = scmp.eq.s32.totalorder %s18, 0
      %p50 = por %p48, %p49
      %p51 = scmp.ne.s32.totalorder %s40, %s43
      %p52 = scmp.eq.s32.totalorder %s23, 1
      %p53 = por %p51, %p52
      %p54 = scmp.ne.s32.totalorder %s43, %s44
      %p55 = scmp.eq.s32.totalorder %s23, 0
      %p56 = por %p54, %p55
      %p57 = scmp.ne.s32.totalorder %s43, %s44
      %p58 = scmp.eq.s32.totalorder %s24, 1
      %p59 = por %p57, %p58
      %p61 = scmp.ne.s32.totalorder %s44, %s60
      %p62 = scmp.eq.s32.totalorder %s24, 0
      %p63 = por %p61, %p62
      %s65 = sadd.s32 %s64, 1
      %p68 = scmp.eq.s32.totalorder %s18, 1
      %p69 = scmp.ne.s32.totalorder %s64, %s66
      %p70 = scmp.eq.s32.totalorder %s18, 0
      %p71 = por %p69, %p70
      %p72 = scmp.ne.s32.totalorder %s64, %s66
      %p73 = scmp.eq.s32.totalorder %s23, 1
      %p74 = por %p72, %p73
      %p75 = scmp.ne.s32.totalorder %s66, %s67
      %p76 = scmp.eq.s32.totalorder %s23, 0
      %p77 = por %p75, %p76
      %p78 = scmp.ne.s32.totalorder %s66, %s67
      %p79 = scmp.eq.s32.totalorder %s24, 1
      %p80 = por %p78, %p79
      %p82 = scmp.ne.s32.totalorder %s67, %s81
      %p83 = scmp.eq.s32.totalorder %s24, 0
      %p84 = por %p82, %p83
      %s86 = sadd.s32 %s85, 1
      %p89 = scmp.eq.s32.totalorder %s18, 1
      %p90 = scmp.ne.s32.totalorder %s85, %s87
      %p91 = scmp.eq.s32.totalorder %s18, 0
      %p92 = por %p90, %p91
      %p93 = scmp.ne.s32.totalorder %s85, %s87
      %p94 = scmp.eq.s32.totalorder %s23, 1
      %p95 = por %p93, %p94
      %p96 = scmp.ne.s32.totalorder %s87, %s88
      %p97 = scmp.eq.s32.totalorder %s23, 0
      %p98 = por %p96, %p97
      %p99 = scmp.ne.s32.totalorder %s87, %s88
      %p100 = scmp.eq.s32.totalorder %s24, 1
      %p101 = por %p99, %p100
      %p103 = scmp.ne.s32.totalorder %s88, %s102
      %p104 = scmp.eq.s32.totalorder %s24, 0
      %p105 = por %p103, %p104
      %s107 = sadd.s32 %s106, 1
      %p110 = scmp.eq.s32.totalorder %s18, 1
      %p111 = scmp.ne.s32.totalorder %s106, %s108
      %p112 = scmp.eq.s32.totalorder %s18, 0
      %p113 = por %p111, %p112
      %p114 = scmp.ne.s32.totalorder %s106, %s108
      %p115 = scmp.eq.s32.totalorder %s23, 1
      %p116 = por %p114, %p115
      %p117 = scmp.ne.s32.totalorder %s108, %s109
      %p118 = scmp.eq.s32.totalorder %s23, 0
      %p119 = por %p117, %p118
      %p120 = scmp.ne.s32.totalorder %s108, %s109
      %p121 = scmp.eq.s32.totalorder %s24, 1
      %p122 = por %p120, %p121
      %p124 = scmp.ne.s32.totalorder %s109, %s123
      %p125 = scmp.eq.s32.totalorder %s24, 0
      %p126 = por %p124, %p125
      %s128 = sadd.s32 %s127, 1
      %p131 = scmp.eq.s32.totalorder %s18, 1
      %p132 = scmp.ne.s32.totalorder %s127, %s129
      %p133 = scmp.eq.s32.totalorder %s18, 0
      %p134 = por %p132, %p133
      %p135 = scmp.ne.s32.totalorder %s127, %s129
      %p136 = scmp.eq.s32.totalorder %s23, 1
      %p137 = por %p135, %p136
      %p138 = scmp.ne.s32.totalorder %s129, %s130
      %p139 = scmp.eq.s32.totalorder %s23, 0
      %p140 = por %p138, %p139
      %p141 = scmp.ne.s32.totalorder %s129, %s130
      %p142 = scmp.eq.s32.totalorder %s24, 1
      %p143 = por %p141, %p142
      %p145 = scmp.ne.s32.totalorder %s130, %s144
      %p146 = scmp.eq.s32.totalorder %s24, 0
      %p147 = por %p145, %p146
      %s149 = sadd.s32 %s148, 1
      %p152 = scmp.eq.s32.totalorder %s18, 1
      %p153 = scmp.ne.s32.totalorder %s148, %s150
      %p154 = scmp.eq.s32.totalorder %s18, 0
      %p155 = por %p153, %p154
      %p156 = scmp.ne.s32.totalorder %s148, %s150
      %p157 = scmp.eq.s32.totalorder %s23, 1
      %p158 = por %p156, %p157
      %p159 = scmp.ne.s32.totalorder %s150, %s151
      %p160 = scmp.eq.s32.totalorder %s23, 0
      %p161 = por %p159, %p160
      %p162 = scmp.ne.s32.totalorder %s150, %s151
      %p163 = scmp.eq.s32.totalorder %s24, 1
      %p164 = por %p162, %p163
      %p166 = scmp.ne.s32.totalorder %s151, %s165
      %p167 = scmp.eq.s32.totalorder %s24, 0
      %p168 = por %p166, %p167
      %s170 = sadd.s32 %s169, 1
      %p173 = scmp.eq.s32.totalorder %s18, 1
      %p174 = scmp.ne.s32.totalorder %s169, %s171
      %p175 = scmp.eq.s32.totalorder %s18, 0
      %p176 = por %p174, %p175
      %p177 = scmp.ne.s32.totalorder %s169, %s171
      %p178 = scmp.eq.s32.totalorder %s23, 1
      %p179 = por %p177, %p178
      %p180 = scmp.ne.s32.totalorder %s171, %s172
      %p181 = scmp.eq.s32.totalorder %s23, 0
      %p182 = por %p180, %p181
      %p183 = scmp.ne.s32.totalorder %s171, %s172
      %p184 = scmp.eq.s32.totalorder %s24, 1
      %p185 = por %p183, %p184
      %p187 = scmp.ne.s32.totalorder %s172, %s186
      %p188 = scmp.eq.s32.totalorder %s24, 0
      %p189 = por %p187, %p188
      %s191 = sadd.s32 %s190, 1
      %p194 = scmp.eq.s32.totalorder %s18, 1
      %p195 = scmp.ne.s32.totalorder %s190, %s192
      %p196 = scmp.eq.s32.totalorder %s18, 0
      %p197 = por %p195, %p196
      %p198 = scmp.ne.s32.totalorder %s190, %s192
      %p199 = scmp.eq.s32.totalorder %s23, 1
      %p200 = por %p198, %p199
      %p201 = scmp.ne.s32.totalorder %s192, %s193
      %p202 = scmp.eq.s32.totalorder %s23, 0
      %p203 = por %p201, %p202
      %p204 = scmp.ne.s32.totalorder %s192, %s193
      %p205 = scmp.eq.s32.totalorder %s24, 1
      %p206 = por %p204, %p205
      %p208 = scmp.ne.s32.totalorder %s193, %s207
      %p209 = scmp.eq.s32.totalorder %s24, 0
      %p210 = por %p208, %p209
      %s212 = sadd.s32 %s211, 1
      %p215 = scmp.eq.s32.totalorder %s18, 1
      %p216 = scmp.ne.s32.totalorder %s211, %s213
      %p217 = scmp.eq.s32.totalorder %s18, 0
      %p218 = por %p216, %p217
      %p219 = scmp.ne.s32.totalorder %s211, %s213
      %p220 = scmp.eq.s32.totalorder %s23, 1
      %p221 = por %p219, %p220
      %p222 = scmp.ne.s32.totalorder %s213, %s214
      %p223 = scmp.eq.s32.totalorder %s23, 0
      %p224 = por %p222, %p223
      %p225 = scmp.ne.s32.totalorder %s213, %s214
      %p226 = scmp.eq.s32.totalorder %s24, 1
      %p227 = por %p225, %p226
      %p229 = scmp.ne.s32.totalorder %s214, %s228
      %p230 = scmp.eq.s32.totalorder %s24, 0
      %p231 = por %p229, %p230
      %s232 = ssub.s32 %s25, %s37
      %s233 = ssub.s32 %s26, %s33
      %s234 = sor.u32 %s232, %s233
      %p235 = scmp.eq.s32.totalorder %s234, 0
      %s237 = sadd.s32 %s236, 1
      %s238 = scalar_select %p235, %s236, %s237
      %p241 = pneg %p235
      %p242 = scmp.eq.s32.totalorder %s18, 1
      %p243 = por %p241, %p242
      %p244 = scmp.ne.s32.totalorder %s236, %s239
      %p245 = scmp.eq.s32.totalorder %s18, 0
      %p246 = por %p244, %p245
      %p247 = scmp.ne.s32.totalorder %s236, %s239
      %p248 = scmp.eq.s32.totalorder %s23, 1
      %p249 = por %p247, %p248
      %p250 = scmp.ne.s32.totalorder %s239, %s240
      %p251 = scmp.eq.s32.totalorder %s23, 0
      %p252 = por %p250, %p251
      %p253 = scmp.ne.s32.totalorder %s239, %s240
      %p254 = scmp.eq.s32.totalorder %s24, 1
      %p255 = por %p253, %p254
      %p257 = scmp.ne.s32.totalorder %s240, %s256
      %p258 = scmp.eq.s32.totalorder %s24, 0
      %p259 = por %p257, %p258
      %p260 = scmp.le.s32.totalorder 1, %s18
      %p261 = scmp.lt.s32.totalorder %s18, 3
      %p262 = pnand %p260, %p261
      %p263 = pneg %p262
      // Predicated region
      $region9: #{tpu_custom_call.1} parent=5 // pred_check
        _
      $region10: #{tpu_custom_call.1} parent=5 // pred_check_branch
        %265 = sbr.rel (%p262) target = $region12
      $region11: #{tpu_custom_call.1} parent=5 // pred_region
        %s266 = ssub.s32 %s18, 1
        // Predicated region
        $region13: #{tpu_custom_call.1} parent=11 // pred_check
          %p267 = pneg %p77
        $region14: #{tpu_custom_call.1} parent=11 // pred_check_branch
          %269 = sbr.rel (%p267) target = $region16
        $region15: #{tpu_custom_call.1} parent=11 // pred_region
          _
        $region16: #{tpu_custom_call.1} parent=11 // pred_fallthru
          _
        // Predicated region
        $region17: #{tpu_custom_call.1} parent=11 // pred_check
          %p270 = pneg %p98
        $region18: #{tpu_custom_call.1} parent=11 // pred_check_branch
          %272 = sbr.rel (%p270) target = $region20
        $region19: #{tpu_custom_call.1} parent=11 // pred_region
          _
        $region20: #{tpu_custom_call.1} parent=11 // pred_fallthru
          _
        // Predicated region
        $region21: #{tpu_custom_call.1} parent=11 // pred_check
          %p273 = pneg %p119
        $region22: #{tpu_custom_call.1} parent=11 // pred_check_branch
          %275 = sbr.rel (%p273) target = $region24
        $region23: #{tpu_custom_call.1} parent=11 // pred_region
          _
        $region24: #{tpu_custom_call.1} parent=11 // pred_fallthru
          _
        // Predicated region
        $region25: #{tpu_custom_call.1} parent=11 // pred_check
          %p276 = pneg %p140
        $region26: #{tpu_custom_call.1} parent=11 // pred_check_branch
          %278 = sbr.rel (%p276) target = $region28
        $region27: #{tpu_custom_call.1} parent=11 // pred_region
          _
        $region28: #{tpu_custom_call.1} parent=11 // pred_fallthru
          _
        // Predicated region
        $region29: #{tpu_custom_call.1} parent=11 // pred_check
          %p279 = pneg %p161
        $region30: #{tpu_custom_call.1} parent=11 // pred_check_branch
          %281 = sbr.rel (%p279) target = $region32
        $region31: #{tpu_custom_call.1} parent=11 // pred_region
          _
        $region32: #{tpu_custom_call.1} parent=11 // pred_fallthru
          _
        // Predicated region
        $region33: #{tpu_custom_call.1} parent=11 // pred_check
          %p282 = pneg %p182
        $region34: #{tpu_custom_call.1} parent=11 // pred_check_branch
          %284 = sbr.rel (%p282) target = $region36
        $region35: #{tpu_custom_call.1} parent=11 // pred_region
          _
        $region36: #{tpu_custom_call.1} parent=11 // pred_fallthru
          _
        // Predicated region
        $region37: #{tpu_custom_call.1} parent=11 // pred_check
          %p285 = pneg %p203
        $region38: #{tpu_custom_call.1} parent=11 // pred_check_branch
          %287 = sbr.rel (%p285) target = $region40
        $region39: #{tpu_custom_call.1} parent=11 // pred_region
          _
        $region40: #{tpu_custom_call.1} parent=11 // pred_fallthru
          _
        // Predicated region
        $region41: #{tpu_custom_call.1} parent=11 // pred_check
          %p288 = pneg %p224
        $region42: #{tpu_custom_call.1} parent=11 // pred_check_branch
          %290 = sbr.rel (%p288) target = $region44
        $region43: #{tpu_custom_call.1} parent=11 // pred_region
          _
        $region44: #{tpu_custom_call.1} parent=11 // pred_fallthru
          _
      $region12: #{tpu_custom_call.1} parent=5 // pred_fallthru
        _
      %p291 = scmp.lt.s32.totalorder %s18, 2
      // Predicated region
      $region45: #{tpu_custom_call.1} parent=5 // pred_check
        %p292 = pneg %p291
      $region46: #{tpu_custom_call.1} parent=5 // pred_check_branch
        %294 = sbr.rel (%p292) target = $region48
      $region47: #{tpu_custom_call.1} parent=5 // pred_region
        // Predicated region
        $region49: #{tpu_custom_call.1} parent=47 // pred_check
          %p295 = pneg %p50
        $region50: #{tpu_custom_call.1} parent=47 // pred_check_branch
          %297 = sbr.rel (%p295) target = $region52
        $region51: #{tpu_custom_call.1} parent=47 // pred_region
          %p298 = scmp.lt.s32.totalorder %s25, 1
          %s299 = scalar_select %p298, %s25, 1
          %s300 = smul.addr %s299, 10
          %s301 = smul.addr %s300, 8
          %s302 = scalar_lea.vmem %s0, %s301
        $region52: #{tpu_custom_call.1} parent=47 // pred_fallthru
          _
      $region48: #{tpu_custom_call.1} parent=5 // pred_fallthru
        _
      %p303 = scmp.le.s32.totalorder 1, %s18
      %p304 = scmp.lt.s32.totalorder %s18, 3
      %p305 = pnand %p303, %p304
      %p306 = pneg %p305
      // Predicated region
      $region53: #{tpu_custom_call.1} parent=5 // pred_check
        _
      $region54: #{tpu_custom_call.1} parent=5 // pred_check_branch
        %308 = sbr.rel (%p305) target = $region56
      $region55: #{tpu_custom_call.1} parent=5 // pred_region
        %s309 = ssub.s32 %s18, 1
        %p310 = scmp.lt.s32.totalorder %s27, 1
        %s311 = scalar_select %p310, %s27, 1
        %s312 = smul.addr %s311, 10
        %s313 = smul.addr %s312, 8
        %s314 = scalar_lea.vmem %s0, %s313
        %p315 = pneg %p56
        %p316 = pneg %p53
        %p317 = pneg %p77
        %p318 = pneg %p74
        %p319 = pneg %p98
        %p320 = pneg %p95
        %p321 = pneg %p119
        %p322 = pneg %p116
        %p323 = pneg %p140
        %p324 = pneg %p137
        %p325 = pneg %p161
        %p326 = pneg %p158
        %p327 = pneg %p182
        %p328 = pneg %p179
        %p329 = pneg %p203
        %p330 = pneg %p200
        %p331 = pneg %p224
        %p332 = pneg %p221
        %p333 = pneg %p252
        %p334 = pneg %p249
        %s335 = sand.u32 %s239, 1
        %s336 = scalar_lea.sflag [#allocation5], %s335
        %s337 = sand.u32 %s239, 1
        %s338 = smul.addr %s337, 8
        %s339 = scalar_lea.vmem [#allocation4], %s338
        %p340 = scmp.lt.s32.totalorder %s27, 1
        %s341 = scalar_select %p340, %s27, 1
        %s342 = smul.addr %s341, 10
        %s343 = smul.addr %s342, 8
        %s344 = scalar_lea.vmem %s0, %s343
        %s346 = smul.u32 %s28, 64
        %s347 = scalar_lea.vmem %s344, %s346
        %v348 = vld [vmem:[%s347] sm:$0xff]
        %v349 = vld [vmem:[%s347 + $0x8] sm:$0xff]
        %v350 = vld [vmem:[%s347 + $0x10] sm:$0xff]
        %v351 = vld [vmem:[%s347 + $0x18] sm:$0xff]
        %v352 = vld [vmem:[%s347 + $0x20] sm:$0xff]
        %v353 = vld [vmem:[%s347 + $0x28] sm:$0xff]
        %v354 = vld [vmem:[%s347 + $0x30] sm:$0xff]
        %v355 = vld [vmem:[%s347 + $0x38] sm:$0xff]
        %v356 = vld [vmem:[%s347 + $0x40] sm:$0xff]
        %v357 = vld [vmem:[%s347 + $0x48] sm:$0x1]
        %v358 = vpack.c.bf16 %v349, %v348
        %v359 = vpack.c.bf16 %v351, %v350
        %v360 = vpack.c.bf16 %v353, %v352
        %v361 = vpack.c.bf16 %v355, %v354
        %v362 = vpack.c.bf16 %v357, %v356
        %v363 = vld [vmem:[%s2] sm:$0x1]
        %v365 = vlaneseq
        %v366 = vshrl.u32 %v365, 7
        %v367 = vsub.s32 0, %v366
        %v368 = vrot.slane %v363, %v367
        %v370 = vld [vmem:[%s1] sm:$0xf]
        %v371 = vld [vmem:[%s1 + $0x4] sm:$0xf]
        %v374 = vunpack.c.l.b16 %v370
        %v375 = vunpack.c.l.b16 %v371
        %v376 = vpack.c.b16 %v375, %v374
        %vm378 = vcmask 130048
        %v380 = vsel %vm378, %v358, 0
        %v383 = vsel %vm378, %v359, 0
        %v386 = vsel %vm378, %v360, 0
        %v389 = vsel %vm378, %v361, 0
        %v392 = vsel %vm378, %v362, 0
        %394 = vmatprep.subr.bf16.mxu0 0
        %395 = vmatpush1.bf16.msra.mxu0 %v376
        %396 = vmatprep.subr.bf16.mxu0 0
        %397 = vmatpush1.bf16.msra.mxu0 0
        %398 = vmatprep.subr.bf16.mxu0 0
        %399 = vmatpush1.bf16.msra.mxu0 0
        %400 = vmatprep.subr.bf16.mxu0 0
        %401 = vmatpush1.bf16.msra.mxu0 0
        %402 = vmatprep.subr.bf16.mxu0 0
        %403 = vmatpush1.bf16.msra.mxu0 0
        %404 = vmatprep.subr.bf16.mxu0 0
        %405 = vmatpush1.bf16.msra.mxu0 0
        %406 = vmatprep.subr.bf16.mxu0 0
        %407 = vmatpush1.bf16.msra.mxu0 0
        %408 = vmatprep.subr.bf16.mxu0 0
        %409 = vmatpush1.bf16.msra.mxu0 0
        %410 = vmatprep.subr.bf16.mxu0 0
        %411 = vmatpush1.bf16.msra.mxu0 0
        %412 = vmatprep.subr.bf16.mxu0 0
        %413 = vmatpush1.bf16.msra.mxu0 0
        %414 = vmatprep.subr.bf16.mxu0 0
        %415 = vmatpush1.bf16.msra.mxu0 0
        %416 = vmatprep.subr.bf16.mxu0 0
        %417 = vmatpush1.bf16.msra.mxu0 0
        %418 = vmatprep.subr.bf16.mxu0 0
        %419 = vmatpush1.bf16.msra.mxu0 0
        %420 = vmatprep.subr.bf16.mxu0 0
        %421 = vmatpush1.bf16.msra.mxu0 0
        %422 = vmatprep.subr.bf16.mxu0 0
        %423 = vmatpush1.bf16.msra.mxu0 0
        %424 = vmatprep.subr.bf16.mxu0 0
        %425 = vmatpush1.bf16.msra.mxu0 0
        %426 = vmatprep.mubr.bf16.mxu0 0
        %427 = vmatmul.mubr.bf16.gmra.mrb[0].mxu0 %v380
        %v428 = vpop.f32.mrb[0].mxu0
        %v429 = vadd.f32 0.0, %v428
        %v430 = vpop.f32.mrb[0].mxu0
        %v431 = vpop.f32.mrb[0].mxu0
        %v432 = vadd.f32 0.0, %v431
        %v433 = vpop.f32.mrb[0].mxu0
        %434 = vmatprep.mubr.bf16.mxu0 0
        %435 = vmatmul.mubr.bf16.gmra.mrb[0].mxu0 %v383
        %v436 = vpop.f32.mrb[0].mxu0
        %v437 = vadd.f32 0.0, %v436
        %v438 = vpop.f32.mrb[0].mxu0
        %v439 = vpop.f32.mrb[0].mxu0
        %v440 = vadd.f32 0.0, %v439
        %v441 = vpop.f32.mrb[0].mxu0
        %442 = vmatprep.mubr.bf16.mxu0 0
        %443 = vmatmul.mubr.bf16.gmra.mrb[0].mxu0 %v386
        %v444 = vpop.f32.mrb[0].mxu0
        %v445 = vadd.f32 0.0, %v444
        %v446 = vpop.f32.mrb[0].mxu0
        %v447 = vpop.f32.mrb[0].mxu0
        %v448 = vadd.f32 0.0, %v447
        %v449 = vpop.f32.mrb[0].mxu0
        %450 = vmatprep.mubr.bf16.mxu0 0
        %451 = vmatmul.mubr.bf16.gmra.mrb[0].mxu0 %v389
        %v452 = vpop.f32.mrb[0].mxu0
        %v453 = vadd.f32 0.0, %v452
        %v454 = vpop.f32.mrb[0].mxu0
        %v455 = vpop.f32.mrb[0].mxu0
        %v456 = vadd.f32 0.0, %v455
        %v457 = vpop.f32.mrb[0].mxu0
        %458 = vmatprep.mubr.bf16.mxu0 0
        %459 = vmatmul.mubr.bf16.gmra.mrb[0].mxu0 %v392
        %v460 = vpop.f32.mrb[0].mxu0
        %v461 = vadd.f32 0.0, %v460
        %v462 = vpop.f32.mrb[0].mxu0
        %v463 = vpop.f32.mrb[0].mxu0
        %v464 = vpop.f32.mrb[0].mxu0
        %465 = vdwg.mxu0
        %v466 = vadd.f32 %v368, %v429
        %v467 = vadd.f32 %v368, %v432
        %v468 = vadd.f32 %v368, %v437
        %v469 = vadd.f32 %v368, %v440
        %v470 = vadd.f32 %v368, %v445
        %v471 = vadd.f32 %v368, %v448
        %v472 = vadd.f32 %v368, %v453
        %v473 = vadd.f32 %v368, %v456
        %v474 = vadd.f32 %v368, %v461
        %s475 = scalar_lea.vmem %s1, 8
        %v476 = vld [vmem:[%s475] sm:$0xf]
        %v477 = vld [vmem:[%s475 + $0x4] sm:$0xf]
        %vm478 = vsmask.f32 7424
        %v479 = vshrl.u32 %v358, 16
        %v481 = vshll.u32 %v358, 16
        %v483 = vrot.slane %v481, 1
        %v484 = vor.u32 %v479, %v483
        %v485 = vshll.u32 %v359, 16
        %v487 = vrot.slane %v485, 1
        %v488 = vsel %vm478, %v484, %v487
        %v489 = vshrl.u32 %v359, 16
        %v491 = vor.u32 %v489, %v487
        %v492 = vshll.u32 %v360, 16
        %v494 = vrot.slane %v492, 1
        %v495 = vsel %vm478, %v491, %v494
        %v496 = vshrl.u32 %v360, 16
        %v498 = vor.u32 %v496, %v494
        %v499 = vshll.u32 %v361, 16
        %v501 = vrot.slane %v499, 1
        %v502 = vsel %vm478, %v498, %v501
        %v503 = vshrl.u32 %v361, 16
        %v505 = vor.u32 %v503, %v501
        %v506 = vshll.u32 %v362, 16
        %v508 = vrot.slane %v506, 1
        %v509 = vsel %vm478, %v505, %v508
        %v510 = vshrl.u32 %v362, 16
        %v512 = vor.u32 %v510, %v508
        %v515 = vunpack.c.l.b16 %v476
        %v516 = vunpack.c.l.b16 %v477
        %v517 = vpack.c.b16 %v516, %v515
        %v520 = vsel %vm378, %v488, 0
        %v523 = vsel %vm378, %v495, 0
        %v526 = vsel %vm378, %v502, 0
        %v529 = vsel %vm378, %v509, 0
        %v532 = vsel %vm378, %v512, 0
        %534 = vmatprep.subr.bf16.mxu0 0
        %535 = vmatpush1.bf16.msra.mxu0 %v517
        %536 = vmatprep.subr.bf16.mxu0 0
        %537 = vmatpush1.bf16.msra.mxu0 0
        %538 = vmatprep.subr.bf16.mxu0 0
        %539 = vmatpush1.bf16.msra.mxu0 0
        %540 = vmatprep.subr.bf16.mxu0 0
        %541 = vmatpush1.bf16.msra.mxu0 0
        %542 = vmatprep.subr.bf16.mxu0 0
        %543 = vmatpush1.bf16.msra.mxu0 0
        %544 = vmatprep.subr.bf16.mxu0 0
        %545 = vmatpush1.bf16.msra.mxu0 0
        %546 = vmatprep.subr.bf16.mxu0 0
        %547 = vmatpush1.bf16.msra.mxu0 0
        %548 = vmatprep.subr.bf16.mxu0 0
        %549 = vmatpush1.bf16.msra.mxu0 0
        %550 = vmatprep.subr.bf16.mxu0 0
        %551 = vmatpush1.bf16.msra.mxu0 0
        %552 = vmatprep.subr.bf16.mxu0 0
        %553 = vmatpush1.bf16.msra.mxu0 0
        %554 = vmatprep.subr.bf16.mxu0 0
        %555 = vmatpush1.bf16.msra.mxu0 0
        %556 = vmatprep.subr.bf16.mxu0 0
        %557 = vmatpush1.bf16.msra.mxu0 0
        %558 = vmatprep.subr.bf16.mxu0 0
        %559 = vmatpush1.bf16.msra.mxu0 0
        %560 = vmatprep.subr.bf16.mxu0 0
        %561 = vmatpush1.bf16.msra.mxu0 0
        %562 = vmatprep.subr.bf16.mxu0 0
        %563 = vmatpush1.bf16.msra.mxu0 0
        %564 = vmatprep.subr.bf16.mxu0 0
        %565 = vmatpush1.bf16.msra.mxu0 0
        %566 = vmatprep.mubr.bf16.mxu0 0
        %567 = vmatmul.mubr.bf16.gmra.mrb[0].mxu0 %v520
        %v568 = vpop.f32.mrb[0].mxu0
        %v569 = vadd.f32 0.0, %v568
        %v570 = vpop.f32.mrb[0].mxu0
        %v571 = vpop.f32.mrb[0].mxu0
        %v572 = vadd.f32 0.0, %v571
        %v573 = vpop.f32.mrb[0].mxu0
        %574 = vmatprep.mubr.bf16.mxu0 0
        %575 = vmatmul.mubr.bf16.gmra.mrb[0].mxu0 %v523
        %v576 = vpop.f32.mrb[0].mxu0
        %v577 = vadd.f32 0.0, %v576
        %v578 = vpop.f32.mrb[0].mxu0
        %v579 = vpop.f32.mrb[0].mxu0
        %v580 = vadd.f32 0.0, %v579
        %v581 = vpop.f32.mrb[0].mxu0
        %582 = vmatprep.mubr.bf16.mxu0 0
        %583 = vmatmul.mubr.bf16.gmra.mrb[0].mxu0 %v526
        %v584 = vpop.f32.mrb[0].mxu0
        %v585 = vadd.f32 0.0, %v584
        %v586 = vpop.f32.mrb[0].mxu0
        %v587 = vpop.f32.mrb[0].mxu0
        %v588 = vadd.f32 0.0, %v587
        %v589 = vpop.f32.mrb[0].mxu0
        %590 = vmatprep.mubr.bf16.mxu0 0
        %591 = vmatmul.mubr.bf16.gmra.mrb[0].mxu0 %v529
        %v592 = vpop.f32.mrb[0].mxu0
        %v593 = vadd.f32 0.0, %v592
        %v594 = vpop.f32.mrb[0].mxu0
        %v595 = vpop.f32.mrb[0].mxu0
        %v596 = vadd.f32 0.0, %v595
        %v597 = vpop.f32.mrb[0].mxu0
        %598 = vmatprep.mubr.bf16.mxu0 0
        %599 = vmatmul.mubr.bf16.gmra.mrb[0].mxu0 %v532
        %v600 = vpop.f32.mrb[0].mxu0
        %v601 = vadd.f32 0.0, %v600
        %v602 = vpop.f32.mrb[0].mxu0
        %v603 = vpop.f32.mrb[0].mxu0
        %v604 = vpop.f32.mrb[0].mxu0
        %605 = vdwg.mxu0
        %v606 = vadd.f32 %v466, %v569
        %v607 = vadd.f32 %v467, %v572
        %v608 = vadd.f32 %v468, %v577
        %v609 = vadd.f32 %v469, %v580
        %v610 = vadd.f32 %v470, %v585
        %v611 = vadd.f32 %v471, %v588
        %v612 = vadd.f32 %v472, %v593
        %v613 = vadd.f32 %v473, %v596
        %v614 = vadd.f32 %v474, %v601
        %s615 = scalar_lea.vmem %s1, 16
        %v616 = vld [vmem:[%s615] sm:$0xf]
        %v617 = vld [vmem:[%s615 + $0x4] sm:$0xf]
        %vm623 = vcmask 1046528
        %v624 = vrot.slane %v358, 1
        %v625 = vrot.slane %v359, 1
        %v626 = vsel %vm623, %v624, %v625
        %v627 = vrot.slane %v360, 1
        %v628 = vsel %vm623, %v625, %v627
        %v629 = vrot.slane %v361, 1
        %v630 = vsel %vm623, %v627, %v629
        %v631 = vrot.slane %v362, 1
        %v632 = vsel %vm623, %v629, %v631
        %v635 = vunpack.c.l.b16 %v616
        %v636 = vunpack.c.l.b16 %v617
        %v637 = vpack.c.b16 %v636, %v635
        %v640 = vsel %vm378, %v626, 0
        %v643 = vsel %vm378, %v628, 0
        %v646 = vsel %vm378, %v630, 0
        %v649 = vsel %vm378, %v632, 0
        %v652 = vsel %vm378, %v631, 0
        %654 = vmatprep.subr.bf16.mxu0 0
        %655 = vmatpush1.bf16.msra.mxu0 %v637
        %656 = vmatprep.subr.bf16.mxu0 0
        %657 = vmatpush1.bf16.msra.mxu0 0
        %658 = vmatprep.subr.bf16.mxu0 0
        %659 = vmatpush1.bf16.msra.mxu0 0
        %660 = vmatprep.subr.bf16.mxu0 0
        %661 = vmatpush1.bf16.msra.mxu0 0
        %662 = vmatprep.subr.bf16.mxu0 0
        %663 = vmatpush1.bf16.msra.mxu0 0
        %664 = vmatprep.subr.bf16.mxu0 0
        %665 = vmatpush1.bf16.msra.mxu0 0
        %666 = vmatprep.subr.bf16.mxu0 0
        %667 = vmatpush1.bf16.msra.mxu0 0
        %668 = vmatprep.subr.bf16.mxu0 0
        %669 = vmatpush1.bf16.msra.mxu0 0
        %670 = vmatprep.subr.bf16.mxu0 0
        %671 = vmatpush1.bf16.msra.mxu0 0
        %672 = vmatprep.subr.bf16.mxu0 0
        %673 = vmatpush1.bf16.msra.mxu0 0
        %674 = vmatprep.subr.bf16.mxu0 0
        %675 = vmatpush1.bf16.msra.mxu0 0
        %676 = vmatprep.subr.bf16.mxu0 0
        %677 = vmatpush1.bf16.msra.mxu0 0
        %678 = vmatprep.subr.bf16.mxu0 0
        %679 = vmatpush1.bf16.msra.mxu0 0
        %680 = vmatprep.subr.bf16.mxu0 0
        %681 = vmatpush1.bf16.msra.mxu0 0
        %682 = vmatprep.subr.bf16.mxu0 0
        %683 = vmatpush1.bf16.msra.mxu0 0
        %684 = vmatprep.subr.bf16.mxu0 0
        %685 = vmatpush1.bf16.msra.mxu0 0
        %686 = vmatprep.mubr.bf16.mxu0 0
        %687 = vmatmul.mubr.bf16.gmra.mrb[0].mxu0 %v640
        %v688 = vpop.f32.mrb[0].mxu0
        %v689 = vadd.f32 0.0, %v688
        %v690 = vpop.f32.mrb[0].mxu0
        %v691 = vpop.f32.mrb[0].mxu0
        %v692 = vadd.f32 0.0, %v691
        %v693 = vpop.f32.mrb[0].mxu0
        %694 = vmatprep.mubr.bf16.mxu0 0
        %695 = vmatmul.mubr.bf16.gmra.mrb[0].mxu0 %v643
        %v696 = vpop.f32.mrb[0].mxu0
        %v697 = vadd.f32 0.0, %v696
        %v698 = vpop.f32.mrb[0].mxu0
        %v699 = vpop.f32.mrb[0].mxu0
        %v700 = vadd.f32 0.0, %v699
        %v701 = vpop.f32.mrb[0].mxu0
        %702 = vmatprep.mubr.bf16.mxu0 0
        %703 = vmatmul.mubr.bf16.gmra.mrb[0].mxu0 %v646
        %v704 = vpop.f32.mrb[0].mxu0
        %v705 = vadd.f32 0.0, %v704
        %v706 = vpop.f32.mrb[0].mxu0
        %v707 = vpop.f32.mrb[0].mxu0
        %v708 = vadd.f32 0.0, %v707
        %v709 = vpop.f32.mrb[0].mxu0
        %710 = vmatprep.mubr.bf16.mxu0 0
        %711 = vmatmul.mubr.bf16.gmra.mrb[0].mxu0 %v649
        %v712 = vpop.f32.mrb[0].mxu0
        %v713 = vadd.f32 0.0, %v712
        %v714 = vpop.f32.mrb[0].mxu0
        %v715 = vpop.f32.mrb[0].mxu0
        %v716 = vadd.f32 0.0, %v715
        %v717 = vpop.f32.mrb[0].mxu0
        %718 = vmatprep.mubr.bf16.mxu0 0
        %719 = vmatmul.mubr.bf16.gmra.mrb[0].mxu0 %v652
        %v720 = vpop.f32.mrb[0].mxu0
        %v721 = vadd.f32 0.0, %v720
        %v722 = vpop.f32.mrb[0].mxu0
        %v723 = vpop.f32.mrb[0].mxu0
        %v724 = vpop.f32.mrb[0].mxu0
        %725 = vdwg.mxu0
        %v726 = vadd.f32 %v606, %v689
        %v727 = vadd.f32 %v607, %v692
        %v728 = vadd.f32 %v608, %v697
        %v729 = vadd.f32 %v609, %v700
        %v730 = vadd.f32 %v610, %v705
        %v731 = vadd.f32 %v611, %v708
        %v732 = vadd.f32 %v612, %v713
        %v733 = vadd.f32 %v613, %v716
        %v734 = vadd.f32 %v614, %v721
        %v735 = vmul.f32 %v726, 0.5
        %v736 = vmul.f32 %v727, 0.5
        %v737 = vmul.f32 %v728, 0.5
        %v738 = vmul.f32 %v729, 0.5
        %v739 = vmul.f32 %v730, 0.5
        %v740 = vmul.f32 %v731, 0.5
        %v741 = vmul.f32 %v732, 0.5
        %v742 = vmul.f32 %v733, 0.5
        %v743 = vmul.f32 %v734, 0.5
        %v744 = vmul.f32 %v726, %v726
        %v745 = vmul.f32 %v727, %v727
        %v746 = vmul.f32 %v728, %v728
        %v747 = vmul.f32 %v729, %v729
        %v748 = vmul.f32 %v730, %v730
        %v749 = vmul.f32 %v731, %v731
        %v750 = vmul.f32 %v732, %v732
        %v751 = vmul.f32 %v733, %v733
        %v752 = vmul.f32 %v734, %v734
        %v753 = vmul.f32 %v744, %v726
        %v754 = vmul.f32 %v745, %v727
        %v755 = vmul.f32 %v746, %v728
        %v756 = vmul.f32 %v747, %v729
        %v757 = vmul.f32 %v748, %v730
        %v758 = vmul.f32 %v749, %v731
        %v759 = vmul.f32 %v750, %v732
        %v760 = vmul.f32 %v751, %v733
        %v761 = vmul.f32 %v752, %v734
        %v762 = vmul.f32 %v753, 0.044715
        %v763 = vmul.f32 %v754, 0.044715
        %v764 = vmul.f32 %v755, 0.044715
        %v765 = vmul.f32 %v756, 0.044715
        %v766 = vmul.f32 %v757, 0.044715
        %v767 = vmul.f32 %v758, 0.044715
        %v768 = vmul.f32 %v759, 0.044715
        %v769 = vmul.f32 %v760, 0.044715
        %v770 = vmul.f32 %v761, 0.044715
        %v771 = vadd.f32 %v726, %v762
        %v772 = vadd.f32 %v727, %v763
        %v773 = vadd.f32 %v728, %v764
        %v774 = vadd.f32 %v729, %v765
        %v775 = vadd.f32 %v730, %v766
        %v776 = vadd.f32 %v731, %v767
        %v777 = vadd.f32 %v732, %v768
        %v778 = vadd.f32 %v733, %v769
        %v779 = vadd.f32 %v734, %v770
        %v780 = vmul.f32 %v771, 0.7978846
        %v781 = vmul.f32 %v772, 0.7978846
        %v782 = vmul.f32 %v773, 0.7978846
        %v783 = vmul.f32 %v774, 0.7978846
        %v784 = vmul.f32 %v775, 0.7978846
        %v785 = vmul.f32 %v776, 0.7978846
        %v786 = vmul.f32 %v777, 0.7978846
        %v787 = vmul.f32 %v778, 0.7978846
        %v788 = vmul.f32 %v779, 0.7978846
        %v789 = vtanh.pop %v780
        %v790 = vtanh.pop %v781
        %v791 = vtanh.pop %v782
        %v792 = vtanh.pop %v783
        %v793 = vtanh.pop %v784
        %v794 = vtanh.pop %v785
        %v795 = vtanh.pop %v786
        %v796 = vtanh.pop %v787
        %v797 = vtanh.pop %v788
        %v798 = vadd.f32 %v789, 1.0
        %v799 = vadd.f32 %v790, 1.0
        %v800 = vadd.f32 %v791, 1.0
        %v801 = vadd.f32 %v792, 1.0
        %v802 = vadd.f32 %v793, 1.0
        %v803 = vadd.f32 %v794, 1.0
        %v804 = vadd.f32 %v795, 1.0
        %v805 = vadd.f32 %v796, 1.0
        %v806 = vadd.f32 %v797, 1.0
        %v807 = vmul.f32 %v735, %v798
        %v808 = vmul.f32 %v736, %v799
        %v809 = vmul.f32 %v737, %v800
        %v810 = vmul.f32 %v738, %v801
        %v811 = vmul.f32 %v739, %v802
        %v812 = vmul.f32 %v740, %v803
        %v813 = vmul.f32 %v741, %v804
        %v814 = vmul.f32 %v742, %v805
        %v815 = vmul.f32 %v743, %v806
        %vm816 = vcmask 261120
        %817 = vst.msk [vmem:[#allocation2] sm:$0xff] %vm816, %v807
        %818 = vst.msk [vmem:[#allocation2 + $0x8] sm:$0xff] %vm816, %v808
        %819 = vst.msk [vmem:[#allocation2 + $0x10] sm:$0xff] %vm816, %v809
        %820 = vst.msk [vmem:[#allocation2 + $0x18] sm:$0xff] %vm816, %v810
        %821 = vst.msk [vmem:[#allocation2 + $0x20] sm:$0xff] %vm816, %v811
        %822 = vst.msk [vmem:[#allocation2 + $0x28] sm:$0xff] %vm816, %v812
        %823 = vst.msk [vmem:[#allocation2 + $0x30] sm:$0xff] %vm816, %v813
        %824 = vst.msk [vmem:[#allocation2 + $0x38] sm:$0xff] %vm816, %v814
        %vm825 = vcmask 260096
        %826 = vst.msk [vmem:[#allocation2 + $0x40] sm:$0x7f] %vm825, %v815
        %v827 = vld [vmem:[%s4] sm:$0x1]
        %v829 = vlaneseq
        %v830 = vshrl.u32 %v829, 7
        %v831 = vsub.s32 0, %v830
        %v832 = vrot.slane %v827, %v831
        %v834 = vld [vmem:[#allocation2] ss:$2 sm:$0xff]
        %s835 = scalar_lea.vmem [#allocation2], 16
        %v836 = vld [vmem:[%s835] ss:$2 sm:$0xff]
        %s837 = scalar_lea.vmem [#allocation2], 32
        %v838 = vld [vmem:[%s837] ss:$2 sm:$0xff]
        %s839 = scalar_lea.vmem [#allocation2], 48
        %v840 = vld [vmem:[%s839] ss:$2 sm:$0xff]
        %s841 = scalar_lea.vmem [#allocation2], 64
        %v842 = vld [vmem:[%s841] ss:$2 sm:$0x7]
        %v843 = vpack.c.bf16 %v836, %v834
        %v844 = vpack.c.bf16 %v840, %v838
        %v845 = vpack.c.bf16 %v842, %v842
        %v846 = vld [vmem:[%s3] sm:$0xf]
        %v847 = vld [vmem:[%s3 + $0x4] sm:$0xf]
        %v848 = vld [vmem:[%s3 + $0x8] sm:$0xf]
        %v849 = vld [vmem:[%s3 + $0xc] sm:$0xf]
        %v854 = vunpack.c.l.b16 %v846
        %v855 = vunpack.c.l.b16 %v847
        %v856 = vunpack.c.l.b16 %v848
        %v857 = vunpack.c.l.b16 %v849
        %v858 = vpack.c.b16 %v855, %v854
        %v859 = vpack.c.b16 %v857, %v856
        %v863 = vsel %vm816, %v843, 0
        %v866 = vsel %vm816, %v844, 0
        %v869 = vsel %vm816, %v845, 0
        %871 = vmatprep.subr.bf16.mxu0 0
        %872 = vmatpush1.bf16.msra.mxu0 %v858
        %873 = vmatprep.subr.bf16.mxu0 0
        %874 = vmatpush1.bf16.msra.mxu0 %v859
        %875 = vmatprep.subr.bf16.mxu0 0
        %876 = vmatpush1.bf16.msra.mxu0 0
        %877 = vmatprep.subr.bf16.mxu0 0
        %878 = vmatpush1.bf16.msra.mxu0 0
        %879 = vmatprep.subr.bf16.mxu0 0
        %880 = vmatpush1.bf16.msra.mxu0 0
        %881 = vmatprep.subr.bf16.mxu0 0
        %882 = vmatpush1.bf16.msra.mxu0 0
        %883 = vmatprep.subr.bf16.mxu0 0
        %884 = vmatpush1.bf16.msra.mxu0 0
        %885 = vmatprep.subr.bf16.mxu0 0
        %886 = vmatpush1.bf16.msra.mxu0 0
        %887 = vmatprep.subr.bf16.mxu0 0
        %888 = vmatpush1.bf16.msra.mxu0 0
        %889 = vmatprep.subr.bf16.mxu0 0
        %890 = vmatpush1.bf16.msra.mxu0 0
        %891 = vmatprep.subr.bf16.mxu0 0
        %892 = vmatpush1.bf16.msra.mxu0 0
        %893 = vmatprep.subr.bf16.mxu0 0
        %894 = vmatpush1.bf16.msra.mxu0 0
        %895 = vmatprep.subr.bf16.mxu0 0
        %896 = vmatpush1.bf16.msra.mxu0 0
        %897 = vmatprep.subr.bf16.mxu0 0
        %898 = vmatpush1.bf16.msra.mxu0 0
        %899 = vmatprep.subr.bf16.mxu0 0
        %900 = vmatpush1.bf16.msra.mxu0 0
        %901 = vmatprep.subr.bf16.mxu0 0
        %902 = vmatpush1.bf16.msra.mxu0 0
        %903 = vmatprep.mubr.bf16.mxu0 0
        %904 = vmatmul.mubr.bf16.gmra.mrb[0].mxu0 %v863
        %v905 = vpop.f32.mrb[0].mxu0
        %v906 = vadd.f32 0.0, %v905
        %v907 = vpop.f32.mrb[0].mxu0
        %v908 = vpop.f32.mrb[0].mxu0
        %v909 = vadd.f32 0.0, %v908
        %v910 = vpop.f32.mrb[0].mxu0
        %911 = vmatprep.mubr.bf16.mxu0 0
        %912 = vmatmul.mubr.bf16.gmra.mrb[0].mxu0 %v866
        %v913 = vpop.f32.mrb[0].mxu0
        %v914 = vadd.f32 0.0, %v913
        %v915 = vpop.f32.mrb[0].mxu0
        %v916 = vpop.f32.mrb[0].mxu0
        %v917 = vadd.f32 0.0, %v916
        %v918 = vpop.f32.mrb[0].mxu0
        %919 = vmatprep.mubr.bf16.mxu0 0
        %920 = vmatmul.mubr.bf16.gmra.mrb[0].mxu0 %v869
        %v921 = vpop.f32.mrb[0].mxu0
        %v922 = vadd.f32 0.0, %v921
        %v923 = vpop.f32.mrb[0].mxu0
        %v924 = vpop.f32.mrb[0].mxu0
        %v925 = vpop.f32.mrb[0].mxu0
        %926 = vdwg.mxu0
        %v927 = vadd.f32 %v832, %v906
        %v928 = vadd.f32 %v832, %v909
        %v929 = vadd.f32 %v832, %v914
        %v930 = vadd.f32 %v832, %v917
        %v931 = vadd.f32 %v832, %v922
        %s932 = scalar_lea.vmem [#allocation2], 1
        %v933 = vld [vmem:[%s932] ss:$2 sm:$0xff]
        %s934 = scalar_lea.vmem [#allocation2], 17
        %v935 = vld [vmem:[%s934] ss:$2 sm:$0xff]
        %s936 = scalar_lea.vmem [#allocation2], 33
        %v937 = vld [vmem:[%s936] ss:$2 sm:$0xff]
        %s938 = scalar_lea.vmem [#allocation2], 49
        %v939 = vld [vmem:[%s938] ss:$2 sm:$0xff]
        %s940 = scalar_lea.vmem [#allocation2], 65
        %v941 = vld [vmem:[%s940] ss:$2 sm:$0x7]
        %v942 = vpack.c.bf16 %v935, %v933
        %v943 = vpack.c.bf16 %v939, %v937
        %v944 = vpack.c.bf16 %v941, %v941
        %s945 = scalar_lea.vmem %s3, 16
        %v946 = vld [vmem:[%s945] sm:$0xf]
        %v947 = vld [vmem:[%s945 + $0x4] sm:$0xf]
        %v948 = vld [vmem:[%s945 + $0x8] sm:$0xf]
        %v949 = vld [vmem:[%s945 + $0xc] sm:$0xf]
        %v954 = vunpack.c.l.b16 %v946
        %v955 = vunpack.c.l.b16 %v947
        %v956 = vunpack.c.l.b16 %v948
        %v957 = vunpack.c.l.b16 %v949
        %v958 = vpack.c.b16 %v955, %v954
        %v959 = vpack.c.b16 %v957, %v956
        %v963 = vsel %vm816, %v942, 0
        %v966 = vsel %vm816, %v943, 0
        %v969 = vsel %vm816, %v944, 0
        %971 = vmatprep.subr.bf16.mxu0 0
        %972 = vmatpush1.bf16.msra.mxu0 %v958
        %973 = vmatprep.subr.bf16.mxu0 0
        %974 = vmatpush1.bf16.msra.mxu0 %v959
        %975 = vmatprep.subr.bf16.mxu0 0
        %976 = vmatpush1.bf16.msra.mxu0 0
        %977 = vmatprep.subr.bf16.mxu0 0
        %978 = vmatpush1.bf16.msra.mxu0 0
        %979 = vmatprep.subr.bf16.mxu0 0
        %980 = vmatpush1.bf16.msra.mxu0 0
        %981 = vmatprep.subr.bf16.mxu0 0
        %982 = vmatpush1.bf16.msra.mxu0 0
        %983 = vmatprep.subr.bf16.mxu0 0
        %984 = vmatpush1.bf16.msra.mxu0 0
        %985 = vmatprep.subr.bf16.mxu0 0
        %986 = vmatpush1.bf16.msra.mxu0 0
        %987 = vmatprep.subr.bf16.mxu0 0
        %988 = vmatpush1.bf16.msra.mxu0 0
        %989 = vmatprep.subr.bf16.mxu0 0
        %990 = vmatpush1.bf16.msra.mxu0 0
        %991 = vmatprep.subr.bf16.mxu0 0
        %992 = vmatpush1.bf16.msra.mxu0 0
        %993 = vmatprep.subr.bf16.mxu0 0
        %994 = vmatpush1.bf16.msra.mxu0 0
        %995 = vmatprep.subr.bf16.mxu0 0
        %996 = vmatpush1.bf16.msra.mxu0 0
        %997 = vmatprep.subr.bf16.mxu0 0
        %998 = vmatpush1.bf16.msra.mxu0 0
        %999 = vmatprep.subr.bf16.mxu0 0
        %1000 = vmatpush1.bf16.msra.mxu0 0
        %1001 = vmatprep.subr.bf16.mxu0 0
        %1002 = vmatpush1.bf16.msra.mxu0 0
        %1003 = vmatprep.mubr.bf16.mxu0 0
        %1004 = vmatmul.mubr.bf16.gmra.mrb[0].mxu0 %v963
        %v1005 = vpop.f32.mrb[0].mxu0
        %v1006 = vadd.f32 0.0, %v1005
        %v1007 = vpop.f32.mrb[0].mxu0
        %v1008 = vpop.f32.mrb[0].mxu0
        %v1009 = vadd.f32 0.0, %v1008
        %v1010 = vpop.f32.mrb[0].mxu0
        %1011 = vmatprep.mubr.bf16.mxu0 0
        %1012 = vmatmul.mubr.bf16.gmra.mrb[0].mxu0 %v966
        %v1013 = vpop.f32.mrb[0].mxu0
        %v1014 = vadd.f32 0.0, %v1013
        %v1015 = vpop.f32.mrb[0].mxu0
        %v1016 = vpop.f32.mrb[0].mxu0
        %v1017 = vadd.f32 0.0, %v1016
        %v1018 = vpop.f32.mrb[0].mxu0
        %1019 = vmatprep.mubr.bf16.mxu0 0
        %1020 = vmatmul.mubr.bf16.gmra.mrb[0].mxu0 %v969
        %v1021 = vpop.f32.mrb[0].mxu0
        %v1022 = vadd.f32 0.0, %v1021
        %v1023 = vpop.f32.mrb[0].mxu0
        %v1024 = vpop.f32.mrb[0].mxu0
        %v1025 = vpop.f32.mrb[0].mxu0
        %1026 = vdwg.mxu0
        %v1027 = vadd.f32 %v927, %v1006
        %v1028 = vadd.f32 %v928, %v1009
        %v1029 = vadd.f32 %v929, %v1014
        %v1030 = vadd.f32 %v930, %v1017
        %v1031 = vadd.f32 %v931, %v1022
        %s1032 = scalar_lea.vmem [#allocation2], 2
        %v1033 = vld [vmem:[%s1032] ss:$2 sm:$0xff]
        %s1034 = scalar_lea.vmem [#allocation2], 18
        %v1035 = vld [vmem:[%s1034] ss:$2 sm:$0xff]
        %s1036 = scalar_lea.vmem [#allocation2], 34
        %v1037 = vld [vmem:[%s1036] ss:$2 sm:$0xff]
        %s1038 = scalar_lea.vmem [#allocation2], 50
        %v1039 = vld [vmem:[%s1038] ss:$2 sm:$0xff]
        %s1040 = scalar_lea.vmem [#allocation2], 66
        %v1041 = vld [vmem:[%s1040] ss:$2 sm:$0x7]
        %v1042 = vpack.c.bf16 %v1035, %v1033
        %v1043 = vpack.c.bf16 %v1039, %v1037
        %v1044 = vpack.c.bf16 %v1041, %v1041
        %s1045 = scalar_lea.vmem %s3, 32
        %v1046 = vld [vmem:[%s1045] sm:$0xf]
        %v1047 = vld [vmem:[%s1045 + $0x4] sm:$0xf]
        %v1048 = vld [vmem:[%s1045 + $0x8] sm:$0xf]
        %v1049 = vld [vmem:[%s1045 + $0xc] sm:$0xf]
        %v1054 = vunpack.c.l.b16 %v1046
        %v1055 = vunpack.c.l.b16 %v1047
        %v1056 = vunpack.c.l.b16 %v1048
        %v1057 = vunpack.c.l.b16 %v1049
        %v1058 = vpack.c.b16 %v1055, %v1054
        %v1059 = vpack.c.b16 %v1057, %v1056
        %v1063 = vsel %vm816, %v1042, 0
        %v1066 = vsel %vm816, %v1043, 0
        %v1069 = vsel %vm816, %v1044, 0
        %1071 = vmatprep.subr.bf16.mxu0 0
        %1072 = vmatpush1.bf16.msra.mxu0 %v1058
        %1073 = vmatprep.subr.bf16.mxu0 0
        %1074 = vmatpush1.bf16.msra.mxu0 %v1059
        %1075 = vmatprep.subr.bf16.mxu0 0
        %1076 = vmatpush1.bf16.msra.mxu0 0
        %1077 = vmatprep.subr.bf16.mxu0 0
        %1078 = vmatpush1.bf16.msra.mxu0 0
        %1079 = vmatprep.subr.bf16.mxu0 0
        %1080 = vmatpush1.bf16.msra.mxu0 0
        %1081 = vmatprep.subr.bf16.mxu0 0
        %1082 = vmatpush1.bf16.msra.mxu0 0
        %1083 = vmatprep.subr.bf16.mxu0 0
        %1084 = vmatpush1.bf16.msra.mxu0 0
        %1085 = vmatprep.subr.bf16.mxu0 0
        %1086 = vmatpush1.bf16.msra.mxu0 0
        %1087 = vmatprep.subr.bf16.mxu0 0
        %1088 = vmatpush1.bf16.msra.mxu0 0
        %1089 = vmatprep.subr.bf16.mxu0 0
        %1090 = vmatpush1.bf16.msra.mxu0 0
        %1091 = vmatprep.subr.bf16.mxu0 0
        %1092 = vmatpush1.bf16.msra.mxu0 0
        %1093 = vmatprep.subr.bf16.mxu0 0
        %1094 = vmatpush1.bf16.msra.mxu0 0
        %1095 = vmatprep.subr.bf16.mxu0 0
        %1096 = vmatpush1.bf16.msra.mxu0 0
        %1097 = vmatprep.subr.bf16.mxu0 0
        %1098 = vmatpush1.bf16.msra.mxu0 0
        %1099 = vmatprep.subr.bf16.mxu0 0
        %1100 = vmatpush1.bf16.msra.mxu0 0
        %1101 = vmatprep.subr.bf16.mxu0 0
        %1102 = vmatpush1.bf16.msra.mxu0 0
        %1103 = vmatprep.mubr.bf16.mxu0 0
        %1104 = vmatmul.mubr.bf16.gmra.mrb[0].mxu0 %v1063
        %v1105 = vpop.f32.mrb[0].mxu0
        %v1106 = vadd.f32 0.0, %v1105
        %v1107 = vpop.f32.mrb[0].mxu0
        %v1108 = vpop.f32.mrb[0].mxu0
        %v1109 = vadd.f32 0.0, %v1108
        %v1110 = vpop.f32.mrb[0].mxu0
        %1111 = vmatprep.mubr.bf16.mxu0 0
        %1112 = vmatmul.mubr.bf16.gmra.mrb[0].mxu0 %v1066
        %v1113 = vpop.f32.mrb[0].mxu0
        %v1114 = vadd.f32 0.0, %v1113
        %v1115 = vpop.f32.mrb[0].mxu0
        %v1116 = vpop.f32.mrb[0].mxu0
        %v1117 = vadd.f32 0.0, %v1116
        %v1118 = vpop.f32.mrb[0].mxu0
        %1119 = vmatprep.mubr.bf16.mxu0 0
        %1120 = vmatmul.mubr.bf16.gmra.mrb[0].mxu0 %v1069
        %v1121 = vpop.f32.mrb[0].mxu0
        %v1122 = vadd.f32 0.0, %v1121
        %v1123 = vpop.f32.mrb[0].mxu0
        %v1124 = vpop.f32.mrb[0].mxu0
        %v1125 = vpop.f32.mrb[0].mxu0
        %1126 = vdwg.mxu0
        %v1127 = vadd.f32 %v1027, %v1106
        %v1128 = vadd.f32 %v1028, %v1109
        %v1129 = vadd.f32 %v1029, %v1114
        %v1130 = vadd.f32 %v1030, %v1117
        %v1131 = vadd.f32 %v1031, %v1122
        %v1132 = vmul.f32 %v1127, 0.5
        %v1133 = vmul.f32 %v1128, 0.5
        %v1134 = vmul.f32 %v1129, 0.5
        %v1135 = vmul.f32 %v1130, 0.5
        %v1136 = vmul.f32 %v1131, 0.5
        %v1137 = vmul.f32 %v1127, %v1127
        %v1138 = vmul.f32 %v1128, %v1128
        %v1139 = vmul.f32 %v1129, %v1129
        %v1140 = vmul.f32 %v1130, %v1130
        %v1141 = vmul.f32 %v1131, %v1131
        %v1142 = vmul.f32 %v1137, %v1127
        %v1143 = vmul.f32 %v1138, %v1128
        %v1144 = vmul.f32 %v1139, %v1129
        %v1145 = vmul.f32 %v1140, %v1130
        %v1146 = vmul.f32 %v1141, %v1131
        %v1147 = vmul.f32 %v1142, 0.044715
        %v1148 = vmul.f32 %v1143, 0.044715
        %v1149 = vmul.f32 %v1144, 0.044715
        %v1150 = vmul.f32 %v1145, 0.044715
        %v1151 = vmul.f32 %v1146, 0.044715
        %v1152 = vadd.f32 %v1127, %v1147
        %v1153 = vadd.f32 %v1128, %v1148
        %v1154 = vadd.f32 %v1129, %v1149
        %v1155 = vadd.f32 %v1130, %v1150
        %v1156 = vadd.f32 %v1131, %v1151
        %v1157 = vmul.f32 %v1152, 0.7978846
        %v1158 = vmul.f32 %v1153, 0.7978846
        %v1159 = vmul.f32 %v1154, 0.7978846
        %v1160 = vmul.f32 %v1155, 0.7978846
        %v1161 = vmul.f32 %v1156, 0.7978846
        %v1162 = vtanh.pop %v1157
        %v1163 = vtanh.pop %v1158
        %v1164 = vtanh.pop %v1159
        %v1165 = vtanh.pop %v1160
        %v1166 = vtanh.pop %v1161
        %v1167 = vadd.f32 %v1162, 1.0
        %v1168 = vadd.f32 %v1163, 1.0
        %v1169 = vadd.f32 %v1164, 1.0
        %v1170 = vadd.f32 %v1165, 1.0
        %v1171 = vadd.f32 %v1166, 1.0
        %v1172 = vmul.f32 %v1132, %v1167
        %v1173 = vmul.f32 %v1133, %v1168
        %v1174 = vmul.f32 %v1134, %v1169
        %v1175 = vmul.f32 %v1135, %v1170
        %v1176 = vmul.f32 %v1136, %v1171
        %1177 = vst.msk [vmem:[#allocation3] sm:$0xff] %vm816, %v1172
        %1178 = vst.msk [vmem:[#allocation3 + $0x8] sm:$0xff] %vm816, %v1173
        %1179 = vst.msk [vmem:[#allocation3 + $0x10] sm:$0xff] %vm816, %v1174
        %1180 = vst.msk [vmem:[#allocation3 + $0x18] sm:$0xff] %vm816, %v1175
        %vm1181 = vcmask 256000
        %1182 = vst.msk [vmem:[#allocation3 + $0x20] sm:$0x7] %vm1181, %v1176
        %v1183 = vld [vmem:[%s6] sm:$0x1]
        %v1185 = vlaneseq
        %v1186 = vshrl.u32 %v1185, 7
        %v1187 = vsub.s32 0, %v1186
        %v1188 = vrot.slane %v1183, %v1187
        %v1190 = vld [vmem:[#allocation3] ss:$2 sm:$0xff]
        %s1191 = scalar_lea.vmem [#allocation3], 16
        %v1192 = vld [vmem:[%s1191] ss:$2 sm:$0xff]
        %s1193 = scalar_lea.vmem [#allocation3], 32
        %v1194 = vld [vmem:[%s1193] ss:$2 sm:$0x1]
        %v1195 = vpack.c.bf16 %v1192, %v1190
        %v1196 = vpack.c.bf16 %v1194, %v1194
        %v1197 = vld [vmem:[%s5] sm:$0xf]
        %v1198 = vld [vmem:[%s5 + $0x4] sm:$0xf]
        %v1199 = vld [vmem:[%s5 + $0x8] sm:$0xf]
        %v1200 = vld [vmem:[%s5 + $0xc] sm:$0xf]
        %v1205 = vunpack.c.l.b16 %v1197
        %v1206 = vunpack.c.l.b16 %v1198
        %v1207 = vunpack.c.l.b16 %v1199
        %v1208 = vunpack.c.l.b16 %v1200
        %v1209 = vpack.c.b16 %v1206, %v1205
        %v1210 = vpack.c.b16 %v1208, %v1207
        %v1214 = vsel %vm816, %v1195, 0
        %v1217 = vsel %vm816, %v1196, 0
        %1219 = vmatprep.subr.bf16.mxu0 0
        %1220 = vmatpush1.bf16.msra.mxu0 %v1209
        %1221 = vmatprep.subr.bf16.mxu0 0
        %1222 = vmatpush1.bf16.msra.mxu0 %v1210
        %1223 = vmatprep.subr.bf16.mxu0 0
        %1224 = vmatpush1.bf16.msra.mxu0 0
        %1225 = vmatprep.subr.bf16.mxu0 0
        %1226 = vmatpush1.bf16.msra.mxu0 0
        %1227 = vmatprep.subr.bf16.mxu0 0
        %1228 = vmatpush1.bf16.msra.mxu0 0
        %1229 = vmatprep.subr.bf16.mxu0 0
        %1230 = vmatpush1.bf16.msra.mxu0 0
        %1231 = vmatprep.subr.bf16.mxu0 0
        %1232 = vmatpush1.bf16.msra.mxu0 0
        %1233 = vmatprep.subr.bf16.mxu0 0
        %1234 = vmatpush1.bf16.msra.mxu0 0
        %1235 = vmatprep.subr.bf16.mxu0 0
        %1236 = vmatpush1.bf16.msra.mxu0 0
        %1237 = vmatprep.subr.bf16.mxu0 0
        %1238 = vmatpush1.bf16.msra.mxu0 0
        %1239 = vmatprep.subr.bf16.mxu0 0
        %1240 = vmatpush1.bf16.msra.mxu0 0
        %1241 = vmatprep.subr.bf16.mxu0 0
        %1242 = vmatpush1.bf16.msra.mxu0 0
        %1243 = vmatprep.subr.bf16.mxu0 0
        %1244 = vmatpush1.bf16.msra.mxu0 0
        %1245 = vmatprep.subr.bf16.mxu0 0
        %1246 = vmatpush1.bf16.msra.mxu0 0
        %1247 = vmatprep.subr.bf16.mxu0 0
        %1248 = vmatpush1.bf16.msra.mxu0 0
        %1249 = vmatprep.subr.bf16.mxu0 0
        %1250 = vmatpush1.bf16.msra.mxu0 0
        %1251 = vmatprep.mubr.bf16.mxu0 0
        %1252 = vmatmul.mubr.bf16.gmra.mrb[0].mxu0 %v1214
        %v1253 = vpop.f32.mrb[0].mxu0
        %v1254 = vadd.f32 0.0, %v1253
        %v1255 = vpop.f32.mrb[0].mxu0
        %v1256 = vpop.f32.mrb[0].mxu0
        %v1257 = vadd.f32 0.0, %v1256
        %v1258 = vpop.f32.mrb[0].mxu0
        %1259 = vmatprep.mubr.bf16.mxu0 0
        %1260 = vmatmul.mubr.bf16.gmra.mrb[0].mxu0 %v1217
        %v1261 = vpop.f32.mrb[0].mxu0
        %v1262 = vadd.f32 0.0, %v1261
        %v1263 = vpop.f32.mrb[0].mxu0
        %v1264 = vpop.f32.mrb[0].mxu0
        %v1265 = vpop.f32.mrb[0].mxu0
        %1266 = vdwg.mxu0
        %v1267 = vadd.f32 %v1188, %v1254
        %v1268 = vadd.f32 %v1188, %v1257
        %v1269 = vadd.f32 %v1188, %v1262
        %s1270 = scalar_lea.vmem [#allocation3], 1
        %v1271 = vld [vmem:[%s1270] ss:$2 sm:$0xff]
        %s1272 = scalar_lea.vmem [#allocation3], 17
        %v1273 = vld [vmem:[%s1272] ss:$2 sm:$0xff]
        %s1274 = scalar_lea.vmem [#allocation3], 33
        %v1275 = vld [vmem:[%s1274] ss:$2 sm:$0x1]
        %v1276 = vpack.c.bf16 %v1273, %v1271
        %v1277 = vpack.c.bf16 %v1275, %v1275
        %s1278 = scalar_lea.vmem %s5, 16
        %v1279 = vld [vmem:[%s1278] sm:$0xf]
        %v1280 = vld [vmem:[%s1278 + $0x4] sm:$0xf]
        %v1281 = vld [vmem:[%s1278 + $0x8] sm:$0xf]
        %v1282 = vld [vmem:[%s1278 + $0xc] sm:$0xf]
        %v1287 = vunpack.c.l.b16 %v1279
        %v1288 = vunpack.c.l.b16 %v1280
        %v1289 = vunpack.c.l.b16 %v1281
        %v1290 = vunpack.c.l.b16 %v1282
        %v1291 = vpack.c.b16 %v1288, %v1287
        %v1292 = vpack.c.b16 %v1290, %v1289
        %v1296 = vsel %vm816, %v1276, 0
        %v1299 = vsel %vm816, %v1277, 0
        %1301 = vmatprep.subr.bf16.mxu0 0
        %1302 = vmatpush1.bf16.msra.mxu0 %v1291
        %1303 = vmatprep.subr.bf16.mxu0 0
        %1304 = vmatpush1.bf16.msra.mxu0 %v1292
        %1305 = vmatprep.subr.bf16.mxu0 0
        %1306 = vmatpush1.bf16.msra.mxu0 0
        %1307 = vmatprep.subr.bf16.mxu0 0
        %1308 = vmatpush1.bf16.msra.mxu0 0
        %1309 = vmatprep.subr.bf16.mxu0 0
        %1310 = vmatpush1.bf16.msra.mxu0 0
        %1311 = vmatprep.subr.bf16.mxu0 0
        %1312 = vmatpush1.bf16.msra.mxu0 0
        %1313 = vmatprep.subr.bf16.mxu0 0
        %1314 = vmatpush1.bf16.msra.mxu0 0
        %1315 = vmatprep.subr.bf16.mxu0 0
        %1316 = vmatpush1.bf16.msra.mxu0 0
        %1317 = vmatprep.subr.bf16.mxu0 0
        %1318 = vmatpush1.bf16.msra.mxu0 0
        %1319 = vmatprep.subr.bf16.mxu0 0
        %1320 = vmatpush1.bf16.msra.mxu0 0
        %1321 = vmatprep.subr.bf16.mxu0 0
        %1322 = vmatpush1.bf16.msra.mxu0 0
        %1323 = vmatprep.subr.bf16.mxu0 0
        %1324 = vmatpush1.bf16.msra.mxu0 0
        %1325 = vmatprep.subr.bf16.mxu0 0
        %1326 = vmatpush1.bf16.msra.mxu0 0
        %1327 = vmatprep.subr.bf16.mxu0 0
        %1328 = vmatpush1.bf16.msra.mxu0 0
        %1329 = vmatprep.subr.bf16.mxu0 0
        %1330 = vmatpush1.bf16.msra.mxu0 0
        %1331 = vmatprep.subr.bf16.mxu0 0
        %1332 = vmatpush1.bf16.msra.mxu0 0
        %1333 = vmatprep.mubr.bf16.mxu0 0
        %1334 = vmatmul.mubr.bf16.gmra.mrb[0].mxu0 %v1296
        %v1335 = vpop.f32.mrb[0].mxu0
        %v1336 = vadd.f32 0.0, %v1335
        %v1337 = vpop.f32.mrb[0].mxu0
        %v1338 = vpop.f32.mrb[0].mxu0
        %v1339 = vadd.f32 0.0, %v1338
        %v1340 = vpop.f32.mrb[0].mxu0
        %1341 = vmatprep.mubr.bf16.mxu0 0
        %1342 = vmatmul.mubr.bf16.gmra.mrb[0].mxu0 %v1299
        %v1343 = vpop.f32.mrb[0].mxu0
        %v1344 = vadd.f32 0.0, %v1343
        %v1345 = vpop.f32.mrb[0].mxu0
        %v1346 = vpop.f32.mrb[0].mxu0
        %v1347 = vpop.f32.mrb[0].mxu0
        %1348 = vdwg.mxu0
        %v1349 = vadd.f32 %v1267, %v1336
        %v1350 = vadd.f32 %v1268, %v1339
        %v1351 = vadd.f32 %v1269, %v1344
        %s1352 = scalar_lea.vmem [#allocation3], 2
        %v1353 = vld [vmem:[%s1352] ss:$2 sm:$0xff]
        %s1354 = scalar_lea.vmem [#allocation3], 18
        %v1355 = vld [vmem:[%s1354] ss:$2 sm:$0xff]
        %s1356 = scalar_lea.vmem [#allocation3], 34
        %v1357 = vld [vmem:[%s1356] ss:$2 sm:$0x1]
        %v1358 = vpack.c.bf16 %v1355, %v1353
        %v1359 = vpack.c.bf16 %v1357, %v1357
        %s1360 = scalar_lea.vmem %s5, 32
        %v1361 = vld [vmem:[%s1360] sm:$0xf]
        %v1362 = vld [vmem:[%s1360 + $0x4] sm:$0xf]
        %v1363 = vld [vmem:[%s1360 + $0x8] sm:$0xf]
        %v1364 = vld [vmem:[%s1360 + $0xc] sm:$0xf]
        %v1369 = vunpack.c.l.b16 %v1361
        %v1370 = vunpack.c.l.b16 %v1362
        %v1371 = vunpack.c.l.b16 %v1363
        %v1372 = vunpack.c.l.b16 %v1364
        %v1373 = vpack.c.b16 %v1370, %v1369
        %v1374 = vpack.c.b16 %v1372, %v1371
        %v1378 = vsel %vm816, %v1358, 0
        %v1381 = vsel %vm816, %v1359, 0
        %1383 = vmatprep.subr.bf16.mxu0 0
        %1384 = vmatpush1.bf16.msra.mxu0 %v1373
        %1385 = vmatprep.subr.bf16.mxu0 0
        %1386 = vmatpush1.bf16.msra.mxu0 %v1374
        %1387 = vmatprep.subr.bf16.mxu0 0
        %1388 = vmatpush1.bf16.msra.mxu0 0
        %1389 = vmatprep.subr.bf16.mxu0 0
        %1390 = vmatpush1.bf16.msra.mxu0 0
        %1391 = vmatprep.subr.bf16.mxu0 0
        %1392 = vmatpush1.bf16.msra.mxu0 0
        %1393 = vmatprep.subr.bf16.mxu0 0
        %1394 = vmatpush1.bf16.msra.mxu0 0
        %1395 = vmatprep.subr.bf16.mxu0 0
        %1396 = vmatpush1.bf16.msra.mxu0 0
        %1397 = vmatprep.subr.bf16.mxu0 0
        %1398 = vmatpush1.bf16.msra.mxu0 0
        %1399 = vmatprep.subr.bf16.mxu0 0
        %1400 = vmatpush1.bf16.msra.mxu0 0
        %1401 = vmatprep.subr.bf16.mxu0 0
        %1402 = vmatpush1.bf16.msra.mxu0 0
        %1403 = vmatprep.subr.bf16.mxu0 0
        %1404 = vmatpush1.bf16.msra.mxu0 0
        %1405 = vmatprep.subr.bf16.mxu0 0
        %1406 = vmatpush1.bf16.msra.mxu0 0
        %1407 = vmatprep.subr.bf16.mxu0 0
        %1408 = vmatpush1.bf16.msra.mxu0 0
        %1409 = vmatprep.subr.bf16.mxu0 0
        %1410 = vmatpush1.bf16.msra.mxu0 0
        %1411 = vmatprep.subr.bf16.mxu0 0
        %1412 = vmatpush1.bf16.msra.mxu0 0
        %1413 = vmatprep.subr.bf16.mxu0 0
        %1414 = vmatpush1.bf16.msra.mxu0 0
        %1415 = vmatprep.mubr.bf16.mxu0 0
        %1416 = vmatmul.mubr.bf16.gmra.mrb[0].mxu0 %v1378
        %v1417 = vpop.f32.mrb[0].mxu0
        %v1418 = vadd.f32 0.0, %v1417
        %v1419 = vpop.f32.mrb[0].mxu0
        %v1420 = vpop.f32.mrb[0].mxu0
        %v1421 = vadd.f32 0.0, %v1420
        %v1422 = vpop.f32.mrb[0].mxu0
        %1423 = vmatprep.mubr.bf16.mxu0 0
        %1424 = vmatmul.mubr.bf16.gmra.mrb[0].mxu0 %v1381
        %v1425 = vpop.f32.mrb[0].mxu0
        %v1426 = vadd.f32 0.0, %v1425
        %v1427 = vpop.f32.mrb[0].mxu0
        %v1428 = vpop.f32.mrb[0].mxu0
        %v1429 = vpop.f32.mrb[0].mxu0
        %1430 = vdwg.mxu0
        %v1431 = vadd.f32 %v1349, %v1418
        %v1432 = vadd.f32 %v1350, %v1421
        %v1433 = vadd.f32 %v1351, %v1426
        %v1434 = vmul.f32 %v1431, 0.5
        %v1435 = vmul.f32 %v1432, 0.5
        %v1436 = vmul.f32 %v1433, 0.5
        %v1437 = vmul.f32 %v1431, %v1431
        %v1438 = vmul.f32 %v1432, %v1432
        %v1439 = vmul.f32 %v1433, %v1433
        %v1440 = vmul.f32 %v1437, %v1431
        %v1441 = vmul.f32 %v1438, %v1432
        %v1442 = vmul.f32 %v1439, %v1433
        %v1443 = vmul.f32 %v1440, 0.044715
        %v1444 = vmul.f32 %v1441, 0.044715
        %v1445 = vmul.f32 %v1442, 0.044715
        %v1446 = vadd.f32 %v1431, %v1443
        %v1447 = vadd.f32 %v1432, %v1444
        %v1448 = vadd.f32 %v1433, %v1445
        %v1449 = vmul.f32 %v1446, 0.7978846
        %v1450 = vmul.f32 %v1447, 0.7978846
        %v1451 = vmul.f32 %v1448, 0.7978846
        %v1452 = vtanh.pop %v1449
        %v1453 = vtanh.pop %v1450
        %v1454 = vtanh.pop %v1451
        %v1455 = vadd.f32 %v1452, 1.0
        %v1456 = vadd.f32 %v1453, 1.0
        %v1457 = vadd.f32 %v1454, 1.0
        %v1458 = vmul.f32 %v1434, %v1455
        %v1459 = vmul.f32 %v1435, %v1456
        %v1460 = vmul.f32 %v1436, %v1457
        %1461 = vst.msk [vmem:[#allocation2] sm:$0xff] %vm816, %v1458
        %1462 = vst.msk [vmem:[#allocation2 + $0x8] sm:$0xff] %vm816, %v1459
        %vm1463 = vcmask 253952
        %1464 = vst.msk [vmem:[#allocation2 + $0x10] sm:$0x1] %vm1463, %v1460
        %v1465 = vld [vmem:[%s8] sm:$0x1]
        %v1467 = vlaneseq
        %v1468 = vshrl.u32 %v1467, 7
        %v1469 = vsub.s32 0, %v1468
        %v1470 = vrot.slane %v1465, %v1469
        %v1472 = vld [vmem:[#allocation2] ss:$2 sm:$0xff]
        %v1473 = vpack.c.bf16 %v1472, %v1472
        %v1474 = vld [vmem:[%s7] sm:$0xf]
        %v1475 = vld [vmem:[%s7 + $0x4] sm:$0xf]
        %v1476 = vld [vmem:[%s7 + $0x8] sm:$0xf]
        %v1477 = vld [vmem:[%s7 + $0xc] sm:$0xf]
        %v1482 = vunpack.c.l.b16 %v1474
        %v1483 = vunpack.c.l.b16 %v1475
        %v1484 = vunpack.c.l.b16 %v1476
        %v1485 = vunpack.c.l.b16 %v1477
        %v1486 = vpack.c.b16 %v1483, %v1482
        %v1487 = vpack.c.b16 %v1485, %v1484
        %v1491 = vsel %vm816, %v1473, 0
        %1493 = vmatprep.subr.bf16.mxu0 0
        %1494 = vmatpush1.bf16.msra.mxu0 %v1486
        %1495 = vmatprep.subr.bf16.mxu0 0
        %1496 = vmatpush1.bf16.msra.mxu0 %v1487
        %1497 = vmatprep.subr.bf16.mxu0 0
        %1498 = vmatpush1.bf16.msra.mxu0 0
        %1499 = vmatprep.subr.bf16.mxu0 0
        %1500 = vmatpush1.bf16.msra.mxu0 0
        %1501 = vmatprep.subr.bf16.mxu0 0
        %1502 = vmatpush1.bf16.msra.mxu0 0
        %1503 = vmatprep.subr.bf16.mxu0 0
        %1504 = vmatpush1.bf16.msra.mxu0 0
        %1505 = vmatprep.subr.bf16.mxu0 0
        %1506 = vmatpush1.bf16.msra.mxu0 0
        %1507 = vmatprep.subr.bf16.mxu0 0
        %1508 = vmatpush1.bf16.msra.mxu0 0
        %1509 = vmatprep.subr.bf16.mxu0 0
        %1510 = vmatpush1.bf16.msra.mxu0 0
        %1511 = vmatprep.subr.bf16.mxu0 0
        %1512 = vmatpush1.bf16.msra.mxu0 0
        %1513 = vmatprep.subr.bf16.mxu0 0
        %1514 = vmatpush1.bf16.msra.mxu0 0
        %1515 = vmatprep.subr.bf16.mxu0 0
        %1516 = vmatpush1.bf16.msra.mxu0 0
        %1517 = vmatprep.subr.bf16.mxu0 0
        %1518 = vmatpush1.bf16.msra.mxu0 0
        %1519 = vmatprep.subr.bf16.mxu0 0
        %1520 = vmatpush1.bf16.msra.mxu0 0
        %1521 = vmatprep.subr.bf16.mxu0 0
        %1522 = vmatpush1.bf16.msra.mxu0 0
        %1523 = vmatprep.subr.bf16.mxu0 0
        %1524 = vmatpush1.bf16.msra.mxu0 0
        %1525 = vmatprep.mubr.bf16.mxu0 0
        %1526 = vmatmul.mubr.bf16.gmra.mrb[0].mxu0 %v1491
        %v1527 = vpop.f32.mrb[0].mxu0
        %v1528 = vadd.f32 0.0, %v1527
        %v1529 = vpop.f32.mrb[0].mxu0
        %v1530 = vpop.f32.mrb[0].mxu0
        %v1531 = vpop.f32.mrb[0].mxu0
        %1532 = vdwg.mxu0
        %v1533 = vadd.f32 %v1470, %v1528
        %v1534 = vld [vmem:[%s932] ss:$2 sm:$0xff]
        %v1535 = vpack.c.bf16 %v1534, %v1534
        %s1536 = scalar_lea.vmem %s7, 16
        %v1537 = vld [vmem:[%s1536] sm:$0xf]
        %v1538 = vld [vmem:[%s1536 + $0x4] sm:$0xf]
        %v1539 = vld [vmem:[%s1536 + $0x8] sm:$0xf]
        %v1540 = vld [vmem:[%s1536 + $0xc] sm:$0xf]
        %v1545 = vunpack.c.l.b16 %v1537
        %v1546 = vunpack.c.l.b16 %v1538
        %v1547 = vunpack.c.l.b16 %v1539
        %v1548 = vunpack.c.l.b16 %v1540
        %v1549 = vpack.c.b16 %v1546, %v1545
        %v1550 = vpack.c.b16 %v1548, %v1547
        %v1554 = vsel %vm816, %v1535, 0
        %1556 = vmatprep.subr.bf16.mxu0 0
        %1557 = vmatpush1.bf16.msra.mxu0 %v1549
        %1558 = vmatprep.subr.bf16.mxu0 0
        %1559 = vmatpush1.bf16.msra.mxu0 %v1550
        %1560 = vmatprep.subr.bf16.mxu0 0
        %1561 = vmatpush1.bf16.msra.mxu0 0
        %1562 = vmatprep.subr.bf16.mxu0 0
        %1563 = vmatpush1.bf16.msra.mxu0 0
        %1564 = vmatprep.subr.bf16.mxu0 0
        %1565 = vmatpush1.bf16.msra.mxu0 0
        %1566 = vmatprep.subr.bf16.mxu0 0
        %1567 = vmatpush1.bf16.msra.mxu0 0
        %1568 = vmatprep.subr.bf16.mxu0 0
        %1569 = vmatpush1.bf16.msra.mxu0 0
        %1570 = vmatprep.subr.bf16.mxu0 0
        %1571 = vmatpush1.bf16.msra.mxu0 0
        %1572 = vmatprep.subr.bf16.mxu0 0
        %1573 = vmatpush1.bf16.msra.mxu0 0
        %1574 = vmatprep.subr.bf16.mxu0 0
        %1575 = vmatpush1.bf16.msra.mxu0 0
        %1576 = vmatprep.subr.bf16.mxu0 0
        %1577 = vmatpush1.bf16.msra.mxu0 0
        %1578 = vmatprep.subr.bf16.mxu0 0
        %1579 = vmatpush1.bf16.msra.mxu0 0
        %1580 = vmatprep.subr.bf16.mxu0 0
        %1581 = vmatpush1.bf16.msra.mxu0 0
        %1582 = vmatprep.subr.bf16.mxu0 0
        %1583 = vmatpush1.bf16.msra.mxu0 0
        %1584 = vmatprep.subr.bf16.mxu0 0
        %1585 = vmatpush1.bf16.msra.mxu0 0
        %1586 = vmatprep.subr.bf16.mxu0 0
        %1587 = vmatpush1.bf16.msra.mxu0 0
        %1588 = vmatprep.mubr.bf16.mxu0 0
        %1589 = vmatmul.mubr.bf16.gmra.mrb[0].mxu0 %v1554
        %v1590 = vpop.f32.mrb[0].mxu0
        %v1591 = vadd.f32 0.0, %v1590
        %v1592 = vpop.f32.mrb[0].mxu0
        %v1593 = vpop.f32.mrb[0].mxu0
        %v1594 = vpop.f32.mrb[0].mxu0
        %1595 = vdwg.mxu0
        %v1596 = vadd.f32 %v1533, %v1591
        %v1597 = vld [vmem:[%s1032] ss:$2 sm:$0xff]
        %v1598 = vpack.c.bf16 %v1597, %v1597
        %s1599 = scalar_lea.vmem %s7, 32
        %v1600 = vld [vmem:[%s1599] sm:$0xf]
        %v1601 = vld [vmem:[%s1599 + $0x4] sm:$0xf]
        %v1602 = vld [vmem:[%s1599 + $0x8] sm:$0xf]
        %v1603 = vld [vmem:[%s1599 + $0xc] sm:$0xf]
        %v1608 = vunpack.c.l.b16 %v1600
        %v1609 = vunpack.c.l.b16 %v1601
        %v1610 = vunpack.c.l.b16 %v1602
        %v1611 = vunpack.c.l.b16 %v1603
        %v1612 = vpack.c.b16 %v1609, %v1608
        %v1613 = vpack.c.b16 %v1611, %v1610
        %v1617 = vsel %vm816, %v1598, 0
        %1619 = vmatprep.subr.bf16.mxu0 0
        %1620 = vmatpush1.bf16.msra.mxu0 %v1612
        %1621 = vmatprep.subr.bf16.mxu0 0
        %1622 = vmatpush1.bf16.msra.mxu0 %v1613
        %1623 = vmatprep.subr.bf16.mxu0 0
        %1624 = vmatpush1.bf16.msra.mxu0 0
        %1625 = vmatprep.subr.bf16.mxu0 0
        %1626 = vmatpush1.bf16.msra.mxu0 0
        %1627 = vmatprep.subr.bf16.mxu0 0
        %1628 = vmatpush1.bf16.msra.mxu0 0
        %1629 = vmatprep.subr.bf16.mxu0 0
        %1630 = vmatpush1.bf16.msra.mxu0 0
        %1631 = vmatprep.subr.bf16.mxu0 0
        %1632 = vmatpush1.bf16.msra.mxu0 0
        %1633 = vmatprep.subr.bf16.mxu0 0
        %1634 = vmatpush1.bf16.msra.mxu0 0
        %1635 = vmatprep.subr.bf16.mxu0 0
        %1636 = vmatpush1.bf16.msra.mxu0 0
        %1637 = vmatprep.subr.bf16.mxu0 0
        %1638 = vmatpush1.bf16.msra.mxu0 0
        %1639 = vmatprep.subr.bf16.mxu0 0
        %1640 = vmatpush1.bf16.msra.mxu0 0
        %1641 = vmatprep.subr.bf16.mxu0 0
        %1642 = vmatpush1.bf16.msra.mxu0 0
        %1643 = vmatprep.subr.bf16.mxu0 0
        %1644 = vmatpush1.bf16.msra.mxu0 0
        %1645 = vmatprep.subr.bf16.mxu0 0
        %1646 = vmatpush1.bf16.msra.mxu0 0
        %1647 = vmatprep.subr.bf16.mxu0 0
        %1648 = vmatpush1.bf16.msra.mxu0 0
        %1649 = vmatprep.subr.bf16.mxu0 0
        %1650 = vmatpush1.bf16.msra.mxu0 0
        %1651 = vmatprep.mubr.bf16.mxu0 0
        %1652 = vmatmul.mubr.bf16.gmra.mrb[0].mxu0 %v1617
        %v1653 = vpop.f32.mrb[0].mxu0
        %v1654 = vadd.f32 0.0, %v1653
        %v1655 = vpop.f32.mrb[0].mxu0
        %v1656 = vpop.f32.mrb[0].mxu0
        %v1657 = vpop.f32.mrb[0].mxu0
        %1658 = vdwg.mxu0
        %v1659 = vadd.f32 %v1596, %v1654
        %v1660 = vmul.f32 %v1659, 0.5
        %v1661 = vmul.f32 %v1659, %v1659
        %v1662 = vmul.f32 %v1661, %v1659
        %v1663 = vmul.f32 %v1662, 0.044715
        %v1664 = vadd.f32 %v1659, %v1663
        %v1665 = vmul.f32 %v1664, 0.7978846
        %v1666 = vtanh.pop %v1665
        %v1667 = vadd.f32 %v1666, 1.0
        %v1668 = vmul.f32 %v1660, %v1667
        %1669 = vst [vmem:[%s339] sm:$0xff] %v1668
        %s1670 = sand.u32 %s239, 1
        %s1671 = scalar_lea.sflag [#allocation5], %s1670
        %s1672 = sand.u32 %s239, 1
        %s1673 = smul.addr %s1672, 8
        %s1674 = scalar_lea.vmem [#allocation4], %s1673
        // Predicated region
        $region57: #{tpu_custom_call.1} parent=55 // pred_check
          %p1675 = pneg %p249
        $region58: #{tpu_custom_call.1} parent=55 // pred_check_branch
          %1677 = sbr.rel (%p1675) target = $region60
        $region59: #{tpu_custom_call.1} parent=55 // pred_region
          %s1679 = ssub.s32 128, 128
          %1680 = vsyncadd %s1671, %s1679
          %s1681 = sadd.s32 %s28, %s27
          %s1682 = smul.addr %s1681, 128
          %s1683 = scalar_lea.hbm %s9, %s1682
          %s1685 = sshll.u32 %s1674, 4
          %s1686 = int_to_ptr.vmem [resolvable:$true] %s1685
          %1688 = dma.vmem_to_hbm [thread:$0]  %s1686, 128, %s1683, %s1671
        $region60: #{tpu_custom_call.1} parent=55 // pred_fallthru
          _
      $region56: #{tpu_custom_call.1} parent=5 // pred_fallthru
        _
      %p1689 = scmp.le.s32.totalorder 2, %s18
      // Predicated region
      $region61: #{tpu_custom_call.1} parent=5 // pred_check
        %p1690 = pneg %p1689
      $region62: #{tpu_custom_call.1} parent=5 // pred_check_branch
        %1692 = sbr.rel (%p1690) target = $region64
      $region63: #{tpu_custom_call.1} parent=5 // pred_region
        %s1693 = ssub.s32 %s18, 2
        // Predicated region
        $region65: #{tpu_custom_call.1} parent=63 // pred_check
          %p1694 = pneg %p255
        $region66: #{tpu_custom_call.1} parent=63 // pred_check_branch
          %1696 = sbr.rel (%p1694) target = $region68
        $region67: #{tpu_custom_call.1} parent=63 // pred_region
          %s1697 = sand.u32 %s240, 1
          %s1698 = scalar_lea.sflag [#allocation5], %s1697
          %s1699 = sand.u32 %s240, 1
          %s1700 = smul.addr %s1699, 8
          %s1701 = scalar_lea.vmem [#allocation4], %s1700
          %1702 = dma.done %s1698, 128
        $region68: #{tpu_custom_call.1} parent=63 // pred_fallthru
          _
      $region64: #{tpu_custom_call.1} parent=5 // pred_fallthru
        _
    $region6: #{tpu_custom_call.1} parent=1 // loop_footer
      %s22 = sadd.s32 1, %s18
    $region7: #{tpu_custom_call.1} parent=1 // loop_footer_branch
      %17 = sbr.rel target = $region3
    $region8: #{tpu_custom_call.1} parent=1 // loop_exit
      _
    %1703 = vsyncpa [#allocation5], 1
    %s1704 = scalar_lea.sflag [#allocation5], 1
    %1705 = vsyncpa %s1704, 1

</llo_original>
